<compile_context>
chip_gen: v7x
topology: tpu7x:2x2x1
jax: 0.10.0
libtpu: 0.0.40
codegen_flags: <defaults>
</compile_context>

<pallas_src>
import functools
import math

import jax
import jax.numpy as jnp
from jax import lax
from jax.experimental import pallas as pl
from jax.experimental.pallas import tpu as pltpu


def _default_block_rows():
    # v7x: 64 MiB VMEM + 2 TensorCores -> smaller tiles so each core gets
    # several pipelined grid steps.  v5e/v6e: big tiles amortize the ~0.35 us
    # per-grid-step overhead (measured 63% -> 85% of HBM roofline at 256->512).
    try:
        kind = jax.devices()[0].device_kind.lower()
    except Exception:
        kind = ""
    return 256 if "v7" in kind else 512


# ----------------------------------------------------------------------------
# Fused kernel: LayerNorm -> sublayer -> (dropout) -> residual add
# ----------------------------------------------------------------------------
def _sublayer_connection_kernel(*refs, sublayer_fn, n_params, eps,
                                has_bits, keep_thr, keep_scale):
    it = iter(refs)
    x_ref = next(it)
    bits_ref = next(it) if has_bits else None
    gamma_ref = next(it)
    beta_ref = next(it)
    param_refs = [next(it) for _ in range(n_params)]
    o_ref = next(it)

    x = x_ref[...].astype(jnp.float32)                  # (tile_rows, d) f32

    # LayerNorm (biased variance, matches nn.LayerNorm).  One-pass statistics:
    # sum(x) and sum(x*x) are independent cross-lane reductions.
    d = x.shape[-1]
    inv_d = 1.0 / d
    s1 = jnp.sum(x, axis=-1, keepdims=True)
    s2 = jnp.sum(x * x, axis=-1, keepdims=True)
    mean = s1 * inv_d
    var = jnp.maximum(s2 * inv_d - mean * mean, 0.0)
    y = (x - mean) * lax.rsqrt(var + eps)               # EUP rsqrt
    y = y * gamma_ref[...] + beta_ref[...]

    # Sublayer, traced inline on the VMEM tile (position-wise).
    y = sublayer_fn(y, *[r[...] for r in param_refs]).astype(jnp.float32)

    # Inverted dropout (training mode only): single integer-threshold compare
    # against raw random bits.  Eval mode (deterministic=True) is the identity.
    if has_bits:
        keep = bits_ref[...] >= jnp.int32(keep_thr)
        y = jnp.where(keep, y * jnp.float32(keep_scale), 0.0)

    o_ref[...] = (x + y).astype(o_ref.dtype)            # residual add


def sublayer_connection(x, gamma, beta, sublayer_fn, sublayer_params, *,
                        eps=1e-6, dropout_rate=0.0, deterministic=True,
                        dropout_rng=None, block_rows=None,
                        sublayer_flops_per_row=None):
    """x: (..., d_model), any float dtype.  sublayer_fn must be position-wise."""
    d = x.shape[-1]
    x2 = x.reshape(-1, d)                 # keep native dtype: no astype, no pad
    n = x2.shape[0]

    if block_rows is None:
        block_rows = _default_block_rows()
    block_rows = max(8, (block_rows // 8) * 8)

    if n <= block_rows:
        tile = n                          # single block == full array dim
    else:
        tile = block_rows                 # ragged last block handled by Pallas
    grid = (pl.cdiv(n, tile),)

    gamma2 = jnp.asarray(gamma, jnp.float32).reshape(1, d)
    beta2 = jnp.asarray(beta, jnp.float32).reshape(1, d)

    # Canonicalize sublayer params to >=2-D so they map onto VMEM blocks.
    params2d = []
    for p in sublayer_params:
        p = jnp.asarray(p)
        if p.ndim == 0:
            p = p.reshape(1, 1)
        elif p.ndim == 1:
            p = p.reshape(1, -1)
        params2d.append(p)

    def row_spec():
        return pl.BlockSpec((tile, d), lambda i: (i, 0))

    def const_spec(a):
        return pl.BlockSpec(a.shape, lambda i, _nd=a.ndim: (0,) * _nd)

    use_dropout = (not deterministic) and dropout_rate > 0.0
    operands = [x2]
    in_specs = [row_spec()]
    keep_thr = 0
    if use_dropout:
        if dropout_rng is None:
            dropout_rng = jax.random.PRNGKey(0)
        raw = jax.random.bits(dropout_rng, (n, d), jnp.uint32)
        bits = lax.bitcast_convert_type(raw, jnp.int32)
        # keep iff signed(bits) >= rate*2^32 - 2^31  ->  P(keep) = 1 - rate
        keep_thr = int(round(float(dropout_rate) * 2.0 ** 32)) - 2 ** 31
        operands.append(bits)
        in_specs.append(row_spec())

    operands += [gamma2, beta2] + params2d
    in_specs += [const_spec(gamma2), const_spec(beta2)] + \
                [const_spec(p) for p in params2d]

    kern = functools.partial(
        _sublayer_connection_kernel,
        sublayer_fn=sublayer_fn,
        n_params=len(params2d),
        eps=float(eps),
        has_bits=use_dropout,
        keep_thr=keep_thr,
        keep_scale=(1.0 / (1.0 - float(dropout_rate))) if use_dropout else 1.0,
    )

    # Advisory cost estimate so XLA can schedule surrounding ops sensibly.
    x_bytes = n * d * jnp.dtype(x.dtype).itemsize
    w_bytes = sum(int(p.size) * jnp.dtype(p.dtype).itemsize for p in params2d)
    bytes_accessed = 2 * x_bytes + w_bytes + 2 * d * 4 + \
        (n * d * 4 if use_dropout else 0)
    flops = n * (int(sublayer_flops_per_row) if sublayer_flops_per_row else 0) \
        + 10 * n * d
    cost = pl.CostEstimate(flops=flops, transcendentals=n,
                           bytes_accessed=bytes_accessed)

    out = pl.pallas_call(
        kern,
        out_shape=jax.ShapeDtypeStruct((n, d), x.dtype),
        grid=grid,
        in_specs=in_specs,
        out_specs=row_spec(),
        compiler_params=pltpu.CompilerParams(
            dimension_semantics=("parallel",),
            vmem_limit_bytes=32 * 1024 * 1024),
        cost_estimate=cost,
    )(*operands)

    return out.reshape(x.shape)


# ----------------------------------------------------------------------------
# Demo sublayer: position-wise feed-forward (Linear -> ReLU -> Linear).
# bf16 MXU inputs, f32 accumulation.  Used both inside the kernel and in the
# pure-JAX reference so the math matches up to accumulation order.
# ----------------------------------------------------------------------------
def ffn_sublayer(y, w1, b1, w2, b2):
    h = jnp.dot(y.astype(jnp.bfloat16), w1,
                preferred_element_type=jnp.float32) + b1
    h = jnp.maximum(h, 0.0)
    o = jnp.dot(h.astype(jnp.bfloat16), w2,
                preferred_element_type=jnp.float32) + b2
    return o


# ----------------------------------------------------------------------------
# Pure-JAX reference (direct translation of the PyTorch module, eval mode)
# ----------------------------------------------------------------------------
def _sublayer_connection_ref(x, gamma, beta, sublayer_fn, params, eps):
    xf = x.astype(jnp.float32)
    mean = jnp.mean(xf, axis=-1, keepdims=True)
    xc = xf - mean
    var = jnp.mean(xc * xc, axis=-1, keepdims=True)
    y = xc * lax.rsqrt(var + eps) * gamma + beta
    d = x.shape[-1]
    y = sublayer_fn(y.reshape(-1, d), *params).reshape(x.shape)
    return xf + y.astype(jnp.float32)     # dropout in eval mode is the identity


if __name__ == "__main__":
    b, s, d_model, d_ff = 8, 64, 128, 256
    dropout_rate = 0.1

    root = jax.random.PRNGKey(0)
    k = jax.random.split(root, 8)

    x = jax.random.normal(k[0], (b, s, d_model), jnp.float32)
    gamma = 1.0 + 0.1 * jax.random.normal(k[1], (d_model,), jnp.float32)
    beta = 0.1 * jax.random.normal(k[2], (d_model,), jnp.float32)

    bound1 = 1.0 / math.sqrt(d_model)
    bound2 = 1.0 / math.sqrt(d_ff)
    w1 = jax.random.uniform(k[3], (d_model, d_ff), jnp.float32,
                            -bound1, bound1).astype(jnp.bfloat16)
    b1 = jax.random.uniform(k[4], (d_ff,), jnp.float32, -bound1, bound1)
    w2 = jax.random.uniform(k[5], (d_ff, d_model), jnp.float32,
                            -bound2, bound2).astype(jnp.bfloat16)
    b2 = jax.random.uniform(k[6], (d_model,), jnp.float32, -bound2, bound2)
    params = (w1, b1, w2, b2)
    ffn_flops_per_row = 4 * d_model * d_ff

    # 1) Eval-mode (deterministic) forward, f32 activations, multi-step grid.
    out = sublayer_connection(x, gamma, beta, ffn_sublayer, params,
                              eps=1e-6, dropout_rate=dropout_rate,
                              deterministic=True, block_rows=256,
                              sublayer_flops_per_row=ffn_flops_per_row)
    out = jax.block_until_ready(out)
    assert out.shape == x.shape and out.dtype == x.dtype
    ref = _sublayer_connection_ref(x, gamma, beta, ffn_sublayer, params, 1e-6)
    err = float(jnp.max(jnp.abs(out.astype(jnp.float32) - ref)))
    assert jnp.allclose(out.astype(jnp.float32), ref,
                        atol=5e-3, rtol=5e-3), f"max abs err {err}"

    # 2) bf16 activations + a row count that is NOT a tile multiple:
    #    exercises the native-dtype I/O path and the ragged (no-pad) last block.
    xb = jax.random.normal(k[7], (3, 40, d_model), jnp.float32).astype(jnp.bfloat16)
    out_b = sublayer_connection(xb, gamma, beta, ffn_sublayer, params,
                                eps=1e-6, dropout_rate=dropout_rate,
                                deterministic=True, block_rows=64,
                                sublayer_flops_per_row=ffn_flops_per_row)
    out_b = jax.block_until_ready(out_b)
    assert out_b.shape == xb.shape and out_b.dtype == jnp.bfloat16
    ref_b = _sublayer_connection_ref(xb, gamma, beta, ffn_sublayer, params, 1e-6)
    err_b = float(jnp.max(jnp.abs(out_b.astype(jnp.float32) - ref_b)))
    assert jnp.allclose(out_b.astype(jnp.float32), ref_b,
                        atol=2e-2, rtol=2e-2), f"max abs err {err_b}"

    # 3) Training-mode dropout (integer-threshold test on precomputed bits).
    out_d = sublayer_connection(x, gamma, beta, ffn_sublayer, params,
                                eps=1e-6, dropout_rate=dropout_rate,
                                deterministic=False,
                                dropout_rng=jax.random.PRNGKey(1234),
                                block_rows=256,
                                sublayer_flops_per_row=ffn_flops_per_row)
    out_d = jax.block_until_ready(out_d)
    assert out_d.shape == x.shape
    # Loose sanity check: dropped positions return exactly x.  (Positions where
    # the sublayer output happens to be exactly zero would also count, but that
    # is essentially a measure-zero event for a matmul+bias output.)
    drop_frac = float(jnp.mean((out_d == x).astype(jnp.float32)))
    assert 0.03 < drop_frac < 0.25, f"unexpected dropout fraction {drop_frac}"

    print("KERNEL_OK")
</pallas_src>

<mosaic_0001>
module attributes {stable_mosaic.version = 11 : i64} {
  func.func @_sublayer_connection_kernel(%arg0: i32, %arg1: memref<256x128xf32, #tpu.memory_space<vmem>>, %arg2: memref<1x128xf32, #tpu.memory_space<vmem>>, %arg3: memref<1x128xf32, #tpu.memory_space<vmem>>, %arg4: memref<128x256xbf16, #tpu.memory_space<vmem>>, %arg5: memref<1x256xf32, #tpu.memory_space<vmem>>, %arg6: memref<256x128xbf16, #tpu.memory_space<vmem>>, %arg7: memref<1x128xf32, #tpu.memory_space<vmem>>, %arg8: memref<256x128xf32, #tpu.memory_space<vmem>>) attributes {dimension_semantics = [#tpu.dimension_semantics<parallel>], iteration_bounds = array<i64: 2>, scalar_prefetch = 0 : i64, scratch_operands = 0 : i64, tpu.core_type = #tpu.core_type<tc>, window_params = [{transform_indices = @transform_0, window_bounds = array<i64: 256, 128>}, {pipeline_mode = #tpu.pipeline_mode<synchronous>, transform_indices = @transform_1, window_bounds = array<i64: 1, 128>}, {pipeline_mode = #tpu.pipeline_mode<synchronous>, transform_indices = @transform_2, window_bounds = array<i64: 1, 128>}, {pipeline_mode = #tpu.pipeline_mode<synchronous>, transform_indices = @transform_3, window_bounds = array<i64: 128, 256>}, {pipeline_mode = #tpu.pipeline_mode<synchronous>, transform_indices = @transform_4, window_bounds = array<i64: 1, 256>}, {pipeline_mode = #tpu.pipeline_mode<synchronous>, transform_indices = @transform_5, window_bounds = array<i64: 256, 128>}, {pipeline_mode = #tpu.pipeline_mode<synchronous>, transform_indices = @transform_6, window_bounds = array<i64: 1, 128>}, {transform_indices = @transform_7, window_bounds = array<i64: 256, 128>}]} {
    %c0 = arith.constant 0 : index
    %c0_0 = arith.constant 0 : index
    %0 = vector.load %arg1[%c0, %c0_0] : memref<256x128xf32, #tpu.memory_space<vmem>>, vector<256x128xf32>
    %cst = arith.constant dense<0.000000e+00> : vector<256xf32>
    %1 = vector.multi_reduction <add>, %0, %cst [1] : vector<256x128xf32> to vector<256xf32>
    %2 = vector.shape_cast %1 : vector<256xf32> to vector<256x1xf32>
    %3 = arith.mulf %0, %0 : vector<256x128xf32>
    %cst_1 = arith.constant dense<0.000000e+00> : vector<256xf32>
    %4 = vector.multi_reduction <add>, %3, %cst_1 [1] : vector<256x128xf32> to vector<256xf32>
    %5 = vector.shape_cast %4 : vector<256xf32> to vector<256x1xf32>
    %cst_2 = arith.constant 7.812500e-03 : f32
    %6 = vector.broadcast %cst_2 : f32 to vector<256x1xf32>
    %7 = arith.mulf %2, %6 : vector<256x1xf32>
    %cst_3 = arith.constant 7.812500e-03 : f32
    %8 = vector.broadcast %cst_3 : f32 to vector<256x1xf32>
    %9 = arith.mulf %5, %8 : vector<256x1xf32>
    %10 = arith.mulf %7, %7 : vector<256x1xf32>
    %11 = arith.subf %9, %10 : vector<256x1xf32>
    %cst_4 = arith.constant 0.000000e+00 : f32
    %12 = vector.broadcast %cst_4 : f32 to vector<256x1xf32>
    %13 = arith.maximumf %11, %12 : vector<256x1xf32>
    %14 = vector.broadcast %7 : vector<256x1xf32> to vector<256x128xf32>
    %15 = arith.subf %0, %14 : vector<256x128xf32>
    %cst_5 = arith.constant 9.99999997E-7 : f32
    %16 = vector.broadcast %cst_5 : f32 to vector<256x1xf32>
    %17 = arith.addf %13, %16 : vector<256x1xf32>
    %18 = math.rsqrt %17 : vector<256x1xf32>
    %19 = vector.broadcast %18 : vector<256x1xf32> to vector<256x128xf32>
    %20 = arith.mulf %15, %19 : vector<256x128xf32>
    %c0_6 = arith.constant 0 : index
    %c0_7 = arith.constant 0 : index
    %21 = vector.load %arg2[%c0_6, %c0_7] : memref<1x128xf32, #tpu.memory_space<vmem>>, vector<1x128xf32>
    %22 = vector.broadcast %21 : vector<1x128xf32> to vector<256x128xf32>
    %23 = arith.mulf %20, %22 : vector<256x128xf32>
    %c0_8 = arith.constant 0 : index
    %c0_9 = arith.constant 0 : index
    %24 = vector.load %arg3[%c0_8, %c0_9] : memref<1x128xf32, #tpu.memory_space<vmem>>, vector<1x128xf32>
    %25 = vector.broadcast %24 : vector<1x128xf32> to vector<256x128xf32>
    %26 = arith.addf %23, %25 : vector<256x128xf32>
    %c0_10 = arith.constant 0 : index
    %c0_11 = arith.constant 0 : index
    %27 = vector.load %arg4[%c0_10, %c0_11] : memref<128x256xbf16, #tpu.memory_space<vmem>>, vector<128x256xbf16>
    %c0_12 = arith.constant 0 : index
    %c0_13 = arith.constant 0 : index
    %28 = vector.load %arg5[%c0_12, %c0_13] : memref<1x256xf32, #tpu.memory_space<vmem>>, vector<1x256xf32>
    %c0_14 = arith.constant 0 : index
    %c0_15 = arith.constant 0 : index
    %29 = vector.load %arg6[%c0_14, %c0_15] : memref<256x128xbf16, #tpu.memory_space<vmem>>, vector<256x128xbf16>
    %c0_16 = arith.constant 0 : index
    %c0_17 = arith.constant 0 : index
    %30 = vector.load %arg7[%c0_16, %c0_17] : memref<1x128xf32, #tpu.memory_space<vmem>>, vector<1x128xf32>
    %31 = arith.truncf %26 : vector<256x128xf32> to vector<256x128xbf16>
    %cst_18 = arith.constant dense<0.000000e+00> : vector<256x256xf32>
    %32 = tpu.matmul %31, %27, %cst_18 {dimension_numbers = #tpu.dot_dimension_numbers<[1], [0], [0], [1], [0, 0, 1, 1], [], []>} : vector<256x128xbf16>, vector<128x256xbf16>, vector<256x256xf32> -> vector<256x256xf32>
    %33 = vector.broadcast %28 : vector<1x256xf32> to vector<256x256xf32>
    %34 = arith.addf %32, %33 : vector<256x256xf32>
    %cst_19 = arith.constant 0.000000e+00 : f32
    %35 = vector.broadcast %cst_19 : f32 to vector<256x256xf32>
    %36 = arith.maximumf %34, %35 : vector<256x256xf32>
    %37 = arith.truncf %36 : vector<256x256xf32> to vector<256x256xbf16>
    %cst_20 = arith.constant dense<0.000000e+00> : vector<256x128xf32>
    %38 = tpu.matmul %37, %29, %cst_20 {dimension_numbers = #tpu.dot_dimension_numbers<[1], [0], [0], [1], [0, 0, 1, 1], [], []>} : vector<256x256xbf16>, vector<256x128xbf16>, vector<256x128xf32> -> vector<256x128xf32>
    %39 = vector.broadcast %30 : vector<1x128xf32> to vector<256x128xf32>
    %40 = arith.addf %38, %39 : vector<256x128xf32>
    %41 = arith.addf %0, %40 : vector<256x128xf32>
    %c0_21 = arith.constant 0 : index
    %c0_22 = arith.constant 0 : index
    %42 = vector.load %arg8[%c0_21, %c0_22] : memref<256x128xf32, #tpu.memory_space<vmem>>, vector<256x128xf32>
    tpu.vector_store %arg8[%c0_21, %c0_22], %41 {strides = array<i32>} : memref<256x128xf32, #tpu.memory_space<vmem>>, vector<256x128xf32>,
    return
  }
  func.func @transform_0(%arg0: i32) -> (i32, i32) {
    %c0_i32 = arith.constant 0 : i32
    %c0_i32_0 = arith.constant 0 : i32
    return %arg0, %c0_i32 : i32, i32
  }
  func.func @transform_1(%arg0: i32) -> (i32, i32) {
    %c0_i32 = arith.constant 0 : i32
    %c0_i32_0 = arith.constant 0 : i32
    %c0_i32_1 = arith.constant 0 : i32
    return %c0_i32, %c0_i32_0 : i32, i32
  }
  func.func @transform_2(%arg0: i32) -> (i32, i32) {
    %c0_i32 = arith.constant 0 : i32
    %c0_i32_0 = arith.constant 0 : i32
    %c0_i32_1 = arith.constant 0 : i32
    return %c0_i32, %c0_i32_0 : i32, i32
  }
  func.func @transform_3(%arg0: i32) -> (i32, i32) {
    %c0_i32 = arith.constant 0 : i32
    %c0_i32_0 = arith.constant 0 : i32
    %c0_i32_1 = arith.constant 0 : i32
    return %c0_i32, %c0_i32_0 : i32, i32
  }
  func.func @transform_4(%arg0: i32) -> (i32, i32) {
    %c0_i32 = arith.constant 0 : i32
    %c0_i32_0 = arith.constant 0 : i32
    %c0_i32_1 = arith.constant 0 : i32
    return %c0_i32, %c0_i32_0 : i32, i32
  }
  func.func @transform_5(%arg0: i32) -> (i32, i32) {
    %c0_i32 = arith.constant 0 : i32
    %c0_i32_0 = arith.constant 0 : i32
    %c0_i32_1 = arith.constant 0 : i32
    return %c0_i32, %c0_i32_0 : i32, i32
  }
  func.func @transform_6(%arg0: i32) -> (i32, i32) {
    %c0_i32 = arith.constant 0 : i32
    %c0_i32_0 = arith.constant 0 : i32
    %c0_i32_1 = arith.constant 0 : i32
    return %c0_i32, %c0_i32_0 : i32, i32
  }
  func.func @transform_7(%arg0: i32) -> (i32, i32) {
    %c0_i32 = arith.constant 0 : i32
    %c0_i32_0 = arith.constant 0 : i32
    return %arg0, %c0_i32 : i32, i32
  }
}

</mosaic_0001>

<llo_original>
// kernel: tpu_custom_call.1
$region0: #{tpu_custom_call.1}
  #allocation0 [shape = 'u32[]', space=smem, size = 0x4, offset = 0x4, fixed_abs, tag = 'smem constant byte address 0x4 - core index']
  #allocation1 [shape = 'u32[144,128]{1,0:T(1,128)}', space=vmem, size = 0x12000, scoped, tag = 'internal scratch']
  %s0 = inlined_call_operand.hbm [shape: f32[512,128], index: 0, kind: input, shape index: {}]
  %s1 = inlined_call_operand.vmem [shape: f32[1,128], index: 1, kind: input, shape index: {}]
  %s2 = inlined_call_operand.vmem [shape: f32[1,128], index: 2, kind: input, shape index: {}]
  %s3 = inlined_call_operand.hbm [shape: bf16[128,256], index: 3, kind: input, shape index: {}]
  %s4 = inlined_call_operand.vmem [shape: f32[1,256], index: 4, kind: input, shape index: {}]
  %s5 = inlined_call_operand.hbm [shape: bf16[256,128], index: 5, kind: input, shape index: {}]
  %s6 = inlined_call_operand.vmem [shape: f32[1,128], index: 6, kind: input, shape index: {}]
  %s7 = inlined_call_operand.hbm [shape: f32[512,128], index: 7, kind: output, shape index: {}]
  %s8 = sld [smem:[#allocation0]]
  $region73: #{tpu_custom_call.1} parent=0
    _
  %s10 = ssub.s32 1, %s8
  %s11 = scalar_select 0, %s10, %s8
  $region1: #{tpu_custom_call.1} parent=0
    #allocation2 [shape = 'u8[262144]{0}', space=vmem, size = 0x40000, scoped, tag = 'input window, operand 0']
    #allocation3 [shape = 's32[2]{0}', space=sflag, size = 0x8, scoped, tag = 'scoped memory for tpu_custom_call.1']
    #allocation4 [shape = 's32[2]{0}', space=sflag, size = 0x8, scoped, tag = 'scoped memory for tpu_custom_call.1']
    #allocation5 [shape = 'u8[65536]{0}', space=vmem, size = 0x10000, scoped, tag = 'input window, operand 3, single buffered']
    #allocation6 [shape = 's32[1]{0}', space=sflag, size = 0x4, scoped, tag = 'scoped memory for tpu_custom_call.1']
    #allocation7 [shape = 'u8[65536]{0}', space=vmem, size = 0x10000, scoped, tag = 'input window, operand 5, single buffered']
    #allocation8 [shape = 'u8[262144]{0}', space=vmem, size = 0x40000, scoped, tag = 'output window, operand 0']
    %12 = vsyncpa [#allocation3], 0
    %s13 = scalar_lea.sflag [#allocation3], 1
    %14 = vsyncpa %s13, 0
    %15 = vsyncpa [#allocation6], 0
    %16 = vsyncpa [#allocation4], 0
    %s17 = scalar_lea.sflag [#allocation4], 1
    %18 = vsyncpa %s17, 0
    loop: start=0, step=1, limit=4
    $region2: #{tpu_custom_call.1} parent=1 // loop_pre_header
      _
    $region3: #{tpu_custom_call.1} parent=1 // loop_header
      %s20 = sphi 0, %s24
      %p21 = scmp.ge.s32.totalorder %s20, 4
      %s30 = sphi 0, %s32
      %s33 = sphi 0, %s30
      %s34 = sphi 0, %s33
      %s50 = sphi 0, %s34
      %s54 = sphi 0, %s54
      %s56 = sphi 0, %s54
      %s57 = sphi 0, %s56
      %s71 = sphi 0, %s57
      %s75 = sphi 0, %s75
      %s77 = sphi 0, %s75
      %s78 = sphi 0, %s77
      %s92 = sphi 0, %s78
      %s96 = sphi 0, %s96
      %s98 = sphi 0, %s96
      %s99 = sphi 0, %s98
      %s113 = sphi 0, %s99
      %s117 = sphi 0, %s117
      %s119 = sphi 0, %s117
      %s120 = sphi 0, %s119
      %s134 = sphi 0, %s120
      %s138 = sphi 0, %s138
      %s140 = sphi 0, %s138
      %s141 = sphi 0, %s140
      %s155 = sphi 0, %s141
      %s159 = sphi 0, %s159
      %s161 = sphi 0, %s159
      %s162 = sphi 0, %s161
      %s176 = sphi 0, %s162
      %s182 = sphi 0, %s184
      %s185 = sphi 0, %s182
      %s186 = sphi 0, %s185
      %s202 = sphi 0, %s186
    $region4: #{tpu_custom_call.1} parent=1 // loop_header_branch
      %23 = sbr.rel (%p21) target = $region8
    $region5: #{tpu_custom_call.1} parent=1 // loop_body
      %s25 = ssub.s32 %s20, 1
      %s26 = ssub.s32 %s20, 2
      %s27 = sadd.s32 %s20, 1
      %s28 = ssub.s32 %s20, %s27
      %p29 = scmp.eq.s32.totalorder %s28, 0
      %s31 = sadd.s32 %s30, 1
      %s32 = scalar_select %p29, %s30, %s31
      %p35 = pneg %p29
      %p36 = scmp.eq.s32.totalorder %s20, 1
      %p37 = por %p35, %p36
      %p38 = scmp.ne.s32.totalorder %s30, %s33
      %p39 = scmp.eq.s32.totalorder %s20, 0
      %p40 = por %p38, %p39
      %p41 = scmp.ne.s32.totalorder %s30, %s33
      %p42 = scmp.eq.s32.totalorder %s25, 1
      %p43 = por %p41, %p42
      %p44 = scmp.ne.s32.totalorder %s33, %s34
      %p45 = scmp.eq.s32.totalorder %s25, 0
      %p46 = por %p44, %p45
      %p47 = scmp.ne.s32.totalorder %s33, %s34
      %p48 = scmp.eq.s32.totalorder %s26, 1
      %p49 = por %p47, %p48
      %p51 = scmp.ne.s32.totalorder %s34, %s50
      %p52 = scmp.eq.s32.totalorder %s26, 0
      %p53 = por %p51, %p52
      %s55 = sadd.s32 %s54, 1
      %p58 = scmp.eq.s32.totalorder %s20, 1
      %p59 = scmp.ne.s32.totalorder %s54, %s56
      %p60 = scmp.eq.s32.totalorder %s20, 0
      %p61 = por %p59, %p60
      %p62 = scmp.ne.s32.totalorder %s54, %s56
      %p63 = scmp.eq.s32.totalorder %s25, 1
      %p64 = por %p62, %p63
      %p65 = scmp.ne.s32.totalorder %s56, %s57
      %p66 = scmp.eq.s32.totalorder %s25, 0
      %p67 = por %p65, %p66
      %p68 = scmp.ne.s32.totalorder %s56, %s57
      %p69 = scmp.eq.s32.totalorder %s26, 1
      %p70 = por %p68, %p69
      %p72 = scmp.ne.s32.totalorder %s57, %s71
      %p73 = scmp.eq.s32.totalorder %s26, 0
      %p74 = por %p72, %p73
      %s76 = sadd.s32 %s75, 1
      %p79 = scmp.eq.s32.totalorder %s20, 1
      %p80 = scmp.ne.s32.totalorder %s75, %s77
      %p81 = scmp.eq.s32.totalorder %s20, 0
      %p82 = por %p80, %p81
      %p83 = scmp.ne.s32.totalorder %s75, %s77
      %p84 = scmp.eq.s32.totalorder %s25, 1
      %p85 = por %p83, %p84
      %p86 = scmp.ne.s32.totalorder %s77, %s78
      %p87 = scmp.eq.s32.totalorder %s25, 0
      %p88 = por %p86, %p87
      %p89 = scmp.ne.s32.totalorder %s77, %s78
      %p90 = scmp.eq.s32.totalorder %s26, 1
      %p91 = por %p89, %p90
      %p93 = scmp.ne.s32.totalorder %s78, %s92
      %p94 = scmp.eq.s32.totalorder %s26, 0
      %p95 = por %p93, %p94
      %s97 = sadd.s32 %s96, 1
      %p100 = scmp.eq.s32.totalorder %s20, 1
      %p101 = scmp.ne.s32.totalorder %s96, %s98
      %p102 = scmp.eq.s32.totalorder %s20, 0
      %p103 = por %p101, %p102
      %p104 = scmp.ne.s32.totalorder %s96, %s98
      %p105 = scmp.eq.s32.totalorder %s25, 1
      %p106 = por %p104, %p105
      %p107 = scmp.ne.s32.totalorder %s98, %s99
      %p108 = scmp.eq.s32.totalorder %s25, 0
      %p109 = por %p107, %p108
      %p110 = scmp.ne.s32.totalorder %s98, %s99
      %p111 = scmp.eq.s32.totalorder %s26, 1
      %p112 = por %p110, %p111
      %p114 = scmp.ne.s32.totalorder %s99, %s113
      %p115 = scmp.eq.s32.totalorder %s26, 0
      %p116 = por %p114, %p115
      %s118 = sadd.s32 %s117, 1
      %p121 = scmp.eq.s32.totalorder %s20, 1
      %p122 = scmp.ne.s32.totalorder %s117, %s119
      %p123 = scmp.eq.s32.totalorder %s20, 0
      %p124 = por %p122, %p123
      %p125 = scmp.ne.s32.totalorder %s117, %s119
      %p126 = scmp.eq.s32.totalorder %s25, 1
      %p127 = por %p125, %p126
      %p128 = scmp.ne.s32.totalorder %s119, %s120
      %p129 = scmp.eq.s32.totalorder %s25, 0
      %p130 = por %p128, %p129
      %p131 = scmp.ne.s32.totalorder %s119, %s120
      %p132 = scmp.eq.s32.totalorder %s26, 1
      %p133 = por %p131, %p132
      %p135 = scmp.ne.s32.totalorder %s120, %s134
      %p136 = scmp.eq.s32.totalorder %s26, 0
      %p137 = por %p135, %p136
      %s139 = sadd.s32 %s138, 1
      %p142 = scmp.eq.s32.totalorder %s20, 1
      %p143 = scmp.ne.s32.totalorder %s138, %s140
      %p144 = scmp.eq.s32.totalorder %s20, 0
      %p145 = por %p143, %p144
      %p146 = scmp.ne.s32.totalorder %s138, %s140
      %p147 = scmp.eq.s32.totalorder %s25, 1
      %p148 = por %p146, %p147
      %p149 = scmp.ne.s32.totalorder %s140, %s141
      %p150 = scmp.eq.s32.totalorder %s25, 0
      %p151 = por %p149, %p150
      %p152 = scmp.ne.s32.totalorder %s140, %s141
      %p153 = scmp.eq.s32.totalorder %s26, 1
      %p154 = por %p152, %p153
      %p156 = scmp.ne.s32.totalorder %s141, %s155
      %p157 = scmp.eq.s32.totalorder %s26, 0
      %p158 = por %p156, %p157
      %s160 = sadd.s32 %s159, 1
      %p163 = scmp.eq.s32.totalorder %s20, 1
      %p164 = scmp.ne.s32.totalorder %s159, %s161
      %p165 = scmp.eq.s32.totalorder %s20, 0
      %p166 = por %p164, %p165
      %p167 = scmp.ne.s32.totalorder %s159, %s161
      %p168 = scmp.eq.s32.totalorder %s25, 1
      %p169 = por %p167, %p168
      %p170 = scmp.ne.s32.totalorder %s161, %s162
      %p171 = scmp.eq.s32.totalorder %s25, 0
      %p172 = por %p170, %p171
      %p173 = scmp.ne.s32.totalorder %s161, %s162
      %p174 = scmp.eq.s32.totalorder %s26, 1
      %p175 = por %p173, %p174
      %p177 = scmp.ne.s32.totalorder %s162, %s176
      %p178 = scmp.eq.s32.totalorder %s26, 0
      %p179 = por %p177, %p178
      %s180 = ssub.s32 %s20, %s27
      %p181 = scmp.eq.s32.totalorder %s180, 0
      %s183 = sadd.s32 %s182, 1
      %s184 = scalar_select %p181, %s182, %s183
      %p187 = pneg %p181
      %p188 = scmp.eq.s32.totalorder %s20, 1
      %p189 = por %p187, %p188
      %p190 = scmp.ne.s32.totalorder %s182, %s185
      %p191 = scmp.eq.s32.totalorder %s20, 0
      %p192 = por %p190, %p191
      %p193 = scmp.ne.s32.totalorder %s182, %s185
      %p194 = scmp.eq.s32.totalorder %s25, 1
      %p195 = por %p193, %p194
      %p196 = scmp.ne.s32.totalorder %s185, %s186
      %p197 = scmp.eq.s32.totalorder %s25, 0
      %p198 = por %p196, %p197
      %p199 = scmp.ne.s32.totalorder %s185, %s186
      %p200 = scmp.eq.s32.totalorder %s26, 1
      %p201 = por %p199, %p200
      %p203 = scmp.ne.s32.totalorder %s186, %s202
      %p204 = scmp.eq.s32.totalorder %s26, 0
      %p205 = por %p203, %p204
      %p206 = scmp.le.s32.totalorder 1, %s20
      %p207 = scmp.lt.s32.totalorder %s20, 3
      %p208 = pnand %p206, %p207
      %p209 = pneg %p208
      // Predicated region
      $region9: #{tpu_custom_call.1} parent=5 // pred_check
        _
      $region10: #{tpu_custom_call.1} parent=5 // pred_check_branch
        %211 = sbr.rel (%p208) target = $region12
      $region11: #{tpu_custom_call.1} parent=5 // pred_region
        %s212 = ssub.s32 %s20, 1
        // Predicated region
        $region13: #{tpu_custom_call.1} parent=11 // pred_check
          %p213 = pneg %p67
        $region14: #{tpu_custom_call.1} parent=11 // pred_check_branch
          %215 = sbr.rel (%p213) target = $region16
        $region15: #{tpu_custom_call.1} parent=11 // pred_region
          _
        $region16: #{tpu_custom_call.1} parent=11 // pred_fallthru
          _
        // Predicated region
        $region17: #{tpu_custom_call.1} parent=11 // pred_check
          %p216 = pneg %p88
        $region18: #{tpu_custom_call.1} parent=11 // pred_check_branch
          %218 = sbr.rel (%p216) target = $region20
        $region19: #{tpu_custom_call.1} parent=11 // pred_region
          _
        $region20: #{tpu_custom_call.1} parent=11 // pred_fallthru
          _
        // Predicated region
        $region21: #{tpu_custom_call.1} parent=11 // pred_check
          %p219 = pneg %p109
        $region22: #{tpu_custom_call.1} parent=11 // pred_check_branch
          %221 = sbr.rel (%p219) target = $region24
        $region23: #{tpu_custom_call.1} parent=11 // pred_region
          %s223 = ssub.s32 2048, 2048
          %224 = vsyncadd [#allocation6], %s223
          %s225 = sshll.u32 [#allocation5], 4
          %s226 = int_to_ptr.vmem [resolvable:$true] %s225
          %231 = dma.hbm_to_vmem [thread:$0]  %s3, 2048, %s226, [#allocation6], 128, 128, 8
        $region24: #{tpu_custom_call.1} parent=11 // pred_fallthru
          _
        // Predicated region
        $region25: #{tpu_custom_call.1} parent=11 // pred_check
          %p232 = pneg %p130
        $region26: #{tpu_custom_call.1} parent=11 // pred_check_branch
          %234 = sbr.rel (%p232) target = $region28
        $region27: #{tpu_custom_call.1} parent=11 // pred_region
          _
        $region28: #{tpu_custom_call.1} parent=11 // pred_fallthru
          _
        // Predicated region
        $region29: #{tpu_custom_call.1} parent=11 // pred_check
          %p235 = pneg %p151
        $region30: #{tpu_custom_call.1} parent=11 // pred_check_branch
          %237 = sbr.rel (%p235) target = $region32
        $region31: #{tpu_custom_call.1} parent=11 // pred_region
          %s239 = ssub.s32 2048, 2048
          %240 = vsyncadd [#allocation6], %s239
          %s241 = sshll.u32 [#allocation7], 4
          %s242 = int_to_ptr.vmem [resolvable:$true] %s241
          %247 = dma.hbm_to_vmem [thread:$0]  %s5, 2048, %s242, [#allocation6], 64, 64, 4
        $region32: #{tpu_custom_call.1} parent=11 // pred_fallthru
          _
        // Predicated region
        $region33: #{tpu_custom_call.1} parent=11 // pred_check
          %p248 = pneg %p172
        $region34: #{tpu_custom_call.1} parent=11 // pred_check_branch
          %250 = sbr.rel (%p248) target = $region36
        $region35: #{tpu_custom_call.1} parent=11 // pred_region
          _
        $region36: #{tpu_custom_call.1} parent=11 // pred_fallthru
          _
      $region12: #{tpu_custom_call.1} parent=5 // pred_fallthru
        _
      %p251 = scmp.lt.s32.totalorder %s20, 2
      // Predicated region
      $region37: #{tpu_custom_call.1} parent=5 // pred_check
        %p252 = pneg %p251
      $region38: #{tpu_custom_call.1} parent=5 // pred_check_branch
        %254 = sbr.rel (%p252) target = $region40
      $region39: #{tpu_custom_call.1} parent=5 // pred_region
        // Predicated region
        $region41: #{tpu_custom_call.1} parent=39 // pred_check
          %p255 = pneg %p40
        $region42: #{tpu_custom_call.1} parent=39 // pred_check_branch
          %257 = sbr.rel (%p255) target = $region44
        $region43: #{tpu_custom_call.1} parent=39 // pred_region
          %s258 = sand.u32 %s30, 1
          %s259 = scalar_lea.sflag [#allocation3], %s258
          %s260 = sand.u32 %s30, 1
          %s261 = smul.addr %s260, 256
          %s262 = scalar_lea.vmem [#allocation2], %s261
          %s263 = smul.u32 32, %s20
          %s265 = ssub.s32 4096, 4096
          %266 = vsyncadd %s259, %s265
          %s267 = smul.addr %s263, 128
          %s268 = scalar_lea.hbm %s0, %s267
          %s269 = sshll.u32 %s262, 4
          %s270 = int_to_ptr.vmem [resolvable:$true] %s269
          %275 = dma.hbm_to_vmem [thread:$0]  %s268, 4096, %s270, %s259, 128, 128, 8
        $region44: #{tpu_custom_call.1} parent=39 // pred_fallthru
          _
      $region40: #{tpu_custom_call.1} parent=5 // pred_fallthru
        _
      %p276 = scmp.le.s32.totalorder 1, %s20
      %p277 = scmp.lt.s32.totalorder %s20, 3
      %p278 = pnand %p276, %p277
      %p279 = pneg %p278
      // Predicated region
      $region45: #{tpu_custom_call.1} parent=5 // pred_check
        _
      $region46: #{tpu_custom_call.1} parent=5 // pred_check_branch
        %281 = sbr.rel (%p278) target = $region48
      $region47: #{tpu_custom_call.1} parent=5 // pred_region
        %s282 = ssub.s32 %s20, 1
        %s283 = sand.u32 %s33, 1
        %s284 = scalar_lea.sflag [#allocation3], %s283
        %s285 = sand.u32 %s33, 1
        %s286 = smul.addr %s285, 256
        %s287 = scalar_lea.vmem [#allocation2], %s286
        // Predicated region
        $region49: #{tpu_custom_call.1} parent=47 // pred_check
          %p288 = pneg %p46
        $region50: #{tpu_custom_call.1} parent=47 // pred_check_branch
          %290 = sbr.rel (%p288) target = $region52
        $region51: #{tpu_custom_call.1} parent=47 // pred_region
          %291 = dma.done %s284, 4096
        $region52: #{tpu_custom_call.1} parent=47 // pred_fallthru
          _
        // Predicated region
        $region53: #{tpu_custom_call.1} parent=47 // pred_check
          %p292 = pneg %p109
        $region54: #{tpu_custom_call.1} parent=47 // pred_check_branch
          %294 = sbr.rel (%p292) target = $region56
        $region55: #{tpu_custom_call.1} parent=47 // pred_region
          %295 = dma.done [#allocation6], 2048
        $region56: #{tpu_custom_call.1} parent=47 // pred_fallthru
          _
        // Predicated region
        $region57: #{tpu_custom_call.1} parent=47 // pred_check
          %p296 = pneg %p151
        $region58: #{tpu_custom_call.1} parent=47 // pred_check_branch
          %298 = sbr.rel (%p296) target = $region60
        $region59: #{tpu_custom_call.1} parent=47 // pred_region
          %299 = dma.done [#allocation6], 2048
        $region60: #{tpu_custom_call.1} parent=47 // pred_fallthru
          _
        %s300 = sand.u32 %s33, 1
        %s301 = scalar_lea.sflag [#allocation3], %s300
        %s302 = sand.u32 %s33, 1
        %s303 = smul.addr %s302, 256
        %s304 = scalar_lea.vmem [#allocation2], %s303
        %p305 = pneg %p46
        %p306 = pneg %p43
        %p307 = pneg %p67
        %p308 = pneg %p64
        %p309 = pneg %p88
        %p310 = pneg %p85
        %p311 = pneg %p109
        %p312 = pneg %p106
        %p313 = pneg %p130
        %p314 = pneg %p127
        %p315 = pneg %p151
        %p316 = pneg %p148
        %p317 = pneg %p172
        %p318 = pneg %p169
        %p319 = pneg %p198
        %p320 = pneg %p195
        %s321 = sand.u32 %s185, 1
        %s322 = scalar_lea.sflag [#allocation4], %s321
        %s323 = sand.u32 %s185, 1
        %s324 = smul.addr %s323, 256
        %s325 = scalar_lea.vmem [#allocation8], %s324
        %s326 = smul.u32 32, %s25
        %s327 = smul.u32 32, %s25
        %v329 = vld [vmem:[%s287] sm:$0xff]
        %v330 = vld [vmem:[%s287 + $0x8] sm:$0xff]
        %v331 = vld [vmem:[%s287 + $0x10] sm:$0xff]
        %v332 = vld [vmem:[%s287 + $0x18] sm:$0xff]
        %v333 = vld [vmem:[%s287 + $0x20] sm:$0xff]
        %v334 = vld [vmem:[%s287 + $0x28] sm:$0xff]
        %v335 = vld [vmem:[%s287 + $0x30] sm:$0xff]
        %v336 = vld [vmem:[%s287 + $0x38] sm:$0xff]
        %v337 = vld [vmem:[%s287 + $0x40] sm:$0xff]
        %v338 = vld [vmem:[%s287 + $0x48] sm:$0xff]
        %v339 = vld [vmem:[%s287 + $0x50] sm:$0xff]
        %v340 = vld [vmem:[%s287 + $0x58] sm:$0xff]
        %v341 = vld [vmem:[%s287 + $0x60] sm:$0xff]
        %v342 = vld [vmem:[%s287 + $0x68] sm:$0xff]
        %v343 = vld [vmem:[%s287 + $0x70] sm:$0xff]
        %v344 = vld [vmem:[%s287 + $0x78] sm:$0xff]
        %v345 = vld [vmem:[%s287 + $0x80] sm:$0xff]
        %v346 = vld [vmem:[%s287 + $0x88] sm:$0xff]
        %v347 = vld [vmem:[%s287 + $0x90] sm:$0xff]
        %v348 = vld [vmem:[%s287 + $0x98] sm:$0xff]
        %v349 = vld [vmem:[%s287 + $0xa0] sm:$0xff]
        %v350 = vld [vmem:[%s287 + $0xa8] sm:$0xff]
        %v351 = vld [vmem:[%s287 + $0xb0] sm:$0xff]
        %v352 = vld [vmem:[%s287 + $0xb8] sm:$0xff]
        %v353 = vld [vmem:[%s287 + $0xc0] sm:$0xff]
        %v354 = vld [vmem:[%s287 + $0xc8] sm:$0xff]
        %v355 = vld [vmem:[%s287 + $0xd0] sm:$0xff]
        %v356 = vld [vmem:[%s287 + $0xd8] sm:$0xff]
        %v357 = vld [vmem:[%s287 + $0xe0] sm:$0xff]
        %v358 = vld [vmem:[%s287 + $0xe8] sm:$0xff]
        %v359 = vld [vmem:[%s287 + $0xf0] sm:$0xff]
        %v360 = vld [vmem:[%s287 + $0xf8] sm:$0xff]
        %361 = vadd.xlane.f32.xlu0 %v329
        %v362 = vpop.xlane.xlu0 %361
        %363 = vadd.xlane.f32.xlu0 %v330
        %v364 = vpop.xlane.xlu0 %363
        %365 = vadd.xlane.f32.xlu0 %v331
        %v366 = vpop.xlane.xlu0 %365
        %367 = vadd.xlane.f32.xlu0 %v332
        %v368 = vpop.xlane.xlu0 %367
        %369 = vadd.xlane.f32.xlu0 %v333
        %v370 = vpop.xlane.xlu0 %369
        %371 = vadd.xlane.f32.xlu0 %v334
        %v372 = vpop.xlane.xlu0 %371
        %373 = vadd.xlane.f32.xlu0 %v335
        %v374 = vpop.xlane.xlu0 %373
        %375 = vadd.xlane.f32.xlu0 %v336
        %v376 = vpop.xlane.xlu0 %375
        %377 = vadd.xlane.f32.xlu0 %v337
        %v378 = vpop.xlane.xlu0 %377
        %379 = vadd.xlane.f32.xlu0 %v338
        %v380 = vpop.xlane.xlu0 %379
        %381 = vadd.xlane.f32.xlu0 %v339
        %v382 = vpop.xlane.xlu0 %381
        %383 = vadd.xlane.f32.xlu0 %v340
        %v384 = vpop.xlane.xlu0 %383
        %385 = vadd.xlane.f32.xlu0 %v341
        %v386 = vpop.xlane.xlu0 %385
        %387 = vadd.xlane.f32.xlu0 %v342
        %v388 = vpop.xlane.xlu0 %387
        %389 = vadd.xlane.f32.xlu0 %v343
        %v390 = vpop.xlane.xlu0 %389
        %391 = vadd.xlane.f32.xlu0 %v344
        %v392 = vpop.xlane.xlu0 %391
        %393 = vadd.xlane.f32.xlu0 %v345
        %v394 = vpop.xlane.xlu0 %393
        %395 = vadd.xlane.f32.xlu0 %v346
        %v396 = vpop.xlane.xlu0 %395
        %397 = vadd.xlane.f32.xlu0 %v347
        %v398 = vpop.xlane.xlu0 %397
        %399 = vadd.xlane.f32.xlu0 %v348
        %v400 = vpop.xlane.xlu0 %399
        %401 = vadd.xlane.f32.xlu0 %v349
        %v402 = vpop.xlane.xlu0 %401
        %403 = vadd.xlane.f32.xlu0 %v350
        %v404 = vpop.xlane.xlu0 %403
        %405 = vadd.xlane.f32.xlu0 %v351
        %v406 = vpop.xlane.xlu0 %405
        %407 = vadd.xlane.f32.xlu0 %v352
        %v408 = vpop.xlane.xlu0 %407
        %409 = vadd.xlane.f32.xlu0 %v353
        %v410 = vpop.xlane.xlu0 %409
        %411 = vadd.xlane.f32.xlu0 %v354
        %v412 = vpop.xlane.xlu0 %411
        %413 = vadd.xlane.f32.xlu0 %v355
        %v414 = vpop.xlane.xlu0 %413
        %415 = vadd.xlane.f32.xlu0 %v356
        %v416 = vpop.xlane.xlu0 %415
        %417 = vadd.xlane.f32.xlu0 %v357
        %v418 = vpop.xlane.xlu0 %417
        %419 = vadd.xlane.f32.xlu0 %v358
        %v420 = vpop.xlane.xlu0 %419
        %421 = vadd.xlane.f32.xlu0 %v359
        %v422 = vpop.xlane.xlu0 %421
        %423 = vadd.xlane.f32.xlu0 %v360
        %v424 = vpop.xlane.xlu0 %423
        %v425 = vmul.f32 %v329, %v329
        %v426 = vmul.f32 %v330, %v330
        %v427 = vmul.f32 %v331, %v331
        %v428 = vmul.f32 %v332, %v332
        %v429 = vmul.f32 %v333, %v333
        %v430 = vmul.f32 %v334, %v334
        %v431 = vmul.f32 %v335, %v335
        %v432 = vmul.f32 %v336, %v336
        %v433 = vmul.f32 %v337, %v337
        %v434 = vmul.f32 %v338, %v338
        %v435 = vmul.f32 %v339, %v339
        %v436 = vmul.f32 %v340, %v340
        %v437 = vmul.f32 %v341, %v341
        %v438 = vmul.f32 %v342, %v342
        %v439 = vmul.f32 %v343, %v343
        %v440 = vmul.f32 %v344, %v344
        %v441 = vmul.f32 %v345, %v345
        %v442 = vmul.f32 %v346, %v346
        %v443 = vmul.f32 %v347, %v347
        %v444 = vmul.f32 %v348, %v348
        %v445 = vmul.f32 %v349, %v349
        %v446 = vmul.f32 %v350, %v350
        %v447 = vmul.f32 %v351, %v351
        %v448 = vmul.f32 %v352, %v352
        %v449 = vmul.f32 %v353, %v353
        %v450 = vmul.f32 %v354, %v354
        %v451 = vmul.f32 %v355, %v355
        %v452 = vmul.f32 %v356, %v356
        %v453 = vmul.f32 %v357, %v357
        %v454 = vmul.f32 %v358, %v358
        %v455 = vmul.f32 %v359, %v359
        %v456 = vmul.f32 %v360, %v360
        %457 = vadd.xlane.f32.xlu0 %v425
        %v458 = vpop.xlane.xlu0 %457
        %459 = vadd.xlane.f32.xlu0 %v426
        %v460 = vpop.xlane.xlu0 %459
        %461 = vadd.xlane.f32.xlu0 %v427
        %v462 = vpop.xlane.xlu0 %461
        %463 = vadd.xlane.f32.xlu0 %v428
        %v464 = vpop.xlane.xlu0 %463
        %465 = vadd.xlane.f32.xlu0 %v429
        %v466 = vpop.xlane.xlu0 %465
        %467 = vadd.xlane.f32.xlu0 %v430
        %v468 = vpop.xlane.xlu0 %467
        %469 = vadd.xlane.f32.xlu0 %v431
        %v470 = vpop.xlane.xlu0 %469
        %471 = vadd.xlane.f32.xlu0 %v432
        %v472 = vpop.xlane.xlu0 %471
        %473 = vadd.xlane.f32.xlu0 %v433
        %v474 = vpop.xlane.xlu0 %473
        %475 = vadd.xlane.f32.xlu0 %v434
        %v476 = vpop.xlane.xlu0 %475
        %477 = vadd.xlane.f32.xlu0 %v435
        %v478 = vpop.xlane.xlu0 %477
        %479 = vadd.xlane.f32.xlu0 %v436
        %v480 = vpop.xlane.xlu0 %479
        %481 = vadd.xlane.f32.xlu0 %v437
        %v482 = vpop.xlane.xlu0 %481
        %483 = vadd.xlane.f32.xlu0 %v438
        %v484 = vpop.xlane.xlu0 %483
        %485 = vadd.xlane.f32.xlu0 %v439
        %v486 = vpop.xlane.xlu0 %485
        %487 = vadd.xlane.f32.xlu0 %v440
        %v488 = vpop.xlane.xlu0 %487
        %489 = vadd.xlane.f32.xlu0 %v441
        %v490 = vpop.xlane.xlu0 %489
        %491 = vadd.xlane.f32.xlu0 %v442
        %v492 = vpop.xlane.xlu0 %491
        %493 = vadd.xlane.f32.xlu0 %v443
        %v494 = vpop.xlane.xlu0 %493
        %495 = vadd.xlane.f32.xlu0 %v444
        %v496 = vpop.xlane.xlu0 %495
        %497 = vadd.xlane.f32.xlu0 %v445
        %v498 = vpop.xlane.xlu0 %497
        %499 = vadd.xlane.f32.xlu0 %v446
        %v500 = vpop.xlane.xlu0 %499
        %501 = vadd.xlane.f32.xlu0 %v447
        %v502 = vpop.xlane.xlu0 %501
        %503 = vadd.xlane.f32.xlu0 %v448
        %v504 = vpop.xlane.xlu0 %503
        %505 = vadd.xlane.f32.xlu0 %v449
        %v506 = vpop.xlane.xlu0 %505
        %507 = vadd.xlane.f32.xlu0 %v450
        %v508 = vpop.xlane.xlu0 %507
        %509 = vadd.xlane.f32.xlu0 %v451
        %v510 = vpop.xlane.xlu0 %509
        %511 = vadd.xlane.f32.xlu0 %v452
        %v512 = vpop.xlane.xlu0 %511
        %513 = vadd.xlane.f32.xlu0 %v453
        %v514 = vpop.xlane.xlu0 %513
        %515 = vadd.xlane.f32.xlu0 %v454
        %v516 = vpop.xlane.xlu0 %515
        %517 = vadd.xlane.f32.xlu0 %v455
        %v518 = vpop.xlane.xlu0 %517
        %519 = vadd.xlane.f32.xlu0 %v456
        %v520 = vpop.xlane.xlu0 %519
        %v521 = vmul.f32 %v362, 0.0078125
        %v522 = vmul.f32 %v364, 0.0078125
        %v523 = vmul.f32 %v366, 0.0078125
        %v524 = vmul.f32 %v368, 0.0078125
        %v525 = vmul.f32 %v370, 0.0078125
        %v526 = vmul.f32 %v372, 0.0078125
        %v527 = vmul.f32 %v374, 0.0078125
        %v528 = vmul.f32 %v376, 0.0078125
        %v529 = vmul.f32 %v378, 0.0078125
        %v530 = vmul.f32 %v380, 0.0078125
        %v531 = vmul.f32 %v382, 0.0078125
        %v532 = vmul.f32 %v384, 0.0078125
        %v533 = vmul.f32 %v386, 0.0078125
        %v534 = vmul.f32 %v388, 0.0078125
        %v535 = vmul.f32 %v390, 0.0078125
        %v536 = vmul.f32 %v392, 0.0078125
        %v537 = vmul.f32 %v394, 0.0078125
        %v538 = vmul.f32 %v396, 0.0078125
        %v539 = vmul.f32 %v398, 0.0078125
        %v540 = vmul.f32 %v400, 0.0078125
        %v541 = vmul.f32 %v402, 0.0078125
        %v542 = vmul.f32 %v404, 0.0078125
        %v543 = vmul.f32 %v406, 0.0078125
        %v544 = vmul.f32 %v408, 0.0078125
        %v545 = vmul.f32 %v410, 0.0078125
        %v546 = vmul.f32 %v412, 0.0078125
        %v547 = vmul.f32 %v414, 0.0078125
        %v548 = vmul.f32 %v416, 0.0078125
        %v549 = vmul.f32 %v418, 0.0078125
        %v550 = vmul.f32 %v420, 0.0078125
        %v551 = vmul.f32 %v422, 0.0078125
        %v552 = vmul.f32 %v424, 0.0078125
        %v553 = vmul.f32 %v458, 0.0078125
        %v554 = vmul.f32 %v460, 0.0078125
        %v555 = vmul.f32 %v462, 0.0078125
        %v556 = vmul.f32 %v464, 0.0078125
        %v557 = vmul.f32 %v466, 0.0078125
        %v558 = vmul.f32 %v468, 0.0078125
        %v559 = vmul.f32 %v470, 0.0078125
        %v560 = vmul.f32 %v472, 0.0078125
        %v561 = vmul.f32 %v474, 0.0078125
        %v562 = vmul.f32 %v476, 0.0078125
        %v563 = vmul.f32 %v478, 0.0078125
        %v564 = vmul.f32 %v480, 0.0078125
        %v565 = vmul.f32 %v482, 0.0078125
        %v566 = vmul.f32 %v484, 0.0078125
        %v567 = vmul.f32 %v486, 0.0078125
        %v568 = vmul.f32 %v488, 0.0078125
        %v569 = vmul.f32 %v490, 0.0078125
        %v570 = vmul.f32 %v492, 0.0078125
        %v571 = vmul.f32 %v494, 0.0078125
        %v572 = vmul.f32 %v496, 0.0078125
        %v573 = vmul.f32 %v498, 0.0078125
        %v574 = vmul.f32 %v500, 0.0078125
        %v575 = vmul.f32 %v502, 0.0078125
        %v576 = vmul.f32 %v504, 0.0078125
        %v577 = vmul.f32 %v506, 0.0078125
        %v578 = vmul.f32 %v508, 0.0078125
        %v579 = vmul.f32 %v510, 0.0078125
        %v580 = vmul.f32 %v512, 0.0078125
        %v581 = vmul.f32 %v514, 0.0078125
        %v582 = vmul.f32 %v516, 0.0078125
        %v583 = vmul.f32 %v518, 0.0078125
        %v584 = vmul.f32 %v520, 0.0078125
        %v585 = vmul.f32 %v521, %v521
        %v586 = vmul.f32 %v522, %v522
        %v587 = vmul.f32 %v523, %v523
        %v588 = vmul.f32 %v524, %v524
        %v589 = vmul.f32 %v525, %v525
        %v590 = vmul.f32 %v526, %v526
        %v591 = vmul.f32 %v527, %v527
        %v592 = vmul.f32 %v528, %v528
        %v593 = vmul.f32 %v529, %v529
        %v594 = vmul.f32 %v530, %v530
        %v595 = vmul.f32 %v531, %v531
        %v596 = vmul.f32 %v532, %v532
        %v597 = vmul.f32 %v533, %v533
        %v598 = vmul.f32 %v534, %v534
        %v599 = vmul.f32 %v535, %v535
        %v600 = vmul.f32 %v536, %v536
        %v601 = vmul.f32 %v537, %v537
        %v602 = vmul.f32 %v538, %v538
        %v603 = vmul.f32 %v539, %v539
        %v604 = vmul.f32 %v540, %v540
        %v605 = vmul.f32 %v541, %v541
        %v606 = vmul.f32 %v542, %v542
        %v607 = vmul.f32 %v543, %v543
        %v608 = vmul.f32 %v544, %v544
        %v609 = vmul.f32 %v545, %v545
        %v610 = vmul.f32 %v546, %v546
        %v611 = vmul.f32 %v547, %v547
        %v612 = vmul.f32 %v548, %v548
        %v613 = vmul.f32 %v549, %v549
        %v614 = vmul.f32 %v550, %v550
        %v615 = vmul.f32 %v551, %v551
        %v616 = vmul.f32 %v552, %v552
        %v617 = vsub.f32 %v553, %v585
        %v618 = vsub.f32 %v554, %v586
        %v619 = vsub.f32 %v555, %v587
        %v620 = vsub.f32 %v556, %v588
        %v621 = vsub.f32 %v557, %v589
        %v622 = vsub.f32 %v558, %v590
        %v623 = vsub.f32 %v559, %v591
        %v624 = vsub.f32 %v560, %v592
        %v625 = vsub.f32 %v561, %v593
        %v626 = vsub.f32 %v562, %v594
        %v627 = vsub.f32 %v563, %v595
        %v628 = vsub.f32 %v564, %v596
        %v629 = vsub.f32 %v565, %v597
        %v630 = vsub.f32 %v566, %v598
        %v631 = vsub.f32 %v567, %v599
        %v632 = vsub.f32 %v568, %v600
        %v633 = vsub.f32 %v569, %v601
        %v634 = vsub.f32 %v570, %v602
        %v635 = vsub.f32 %v571, %v603
        %v636 = vsub.f32 %v572, %v604
        %v637 = vsub.f32 %v573, %v605
        %v638 = vsub.f32 %v574, %v606
        %v639 = vsub.f32 %v575, %v607
        %v640 = vsub.f32 %v576, %v608
        %v641 = vsub.f32 %v577, %v609
        %v642 = vsub.f32 %v578, %v610
        %v643 = vsub.f32 %v579, %v611
        %v644 = vsub.f32 %v580, %v612
        %v645 = vsub.f32 %v581, %v613
        %v646 = vsub.f32 %v582, %v614
        %v647 = vsub.f32 %v583, %v615
        %v648 = vsub.f32 %v584, %v616
        %v649 = vmax.f32 %v617, 0.0
        %v650 = vmax.f32 %v618, 0.0
        %v651 = vmax.f32 %v619, 0.0
        %v652 = vmax.f32 %v620, 0.0
        %v653 = vmax.f32 %v621, 0.0
        %v654 = vmax.f32 %v622, 0.0
        %v655 = vmax.f32 %v623, 0.0
        %v656 = vmax.f32 %v624, 0.0
        %v657 = vmax.f32 %v625, 0.0
        %v658 = vmax.f32 %v626, 0.0
        %v659 = vmax.f32 %v627, 0.0
        %v660 = vmax.f32 %v628, 0.0
        %v661 = vmax.f32 %v629, 0.0
        %v662 = vmax.f32 %v630, 0.0
        %v663 = vmax.f32 %v631, 0.0
        %v664 = vmax.f32 %v632, 0.0
        %v665 = vmax.f32 %v633, 0.0
        %v666 = vmax.f32 %v634, 0.0
        %v667 = vmax.f32 %v635, 0.0
        %v668 = vmax.f32 %v636, 0.0
        %v669 = vmax.f32 %v637, 0.0
        %v670 = vmax.f32 %v638, 0.0
        %v671 = vmax.f32 %v639, 0.0
        %v672 = vmax.f32 %v640, 0.0
        %v673 = vmax.f32 %v641, 0.0
        %v674 = vmax.f32 %v642, 0.0
        %v675 = vmax.f32 %v643, 0.0
        %v676 = vmax.f32 %v644, 0.0
        %v677 = vmax.f32 %v645, 0.0
        %v678 = vmax.f32 %v646, 0.0
        %v679 = vmax.f32 %v647, 0.0
        %v680 = vmax.f32 %v648, 0.0
        %v681 = vsub.f32 %v329, %v521
        %v682 = vsub.f32 %v330, %v522
        %v683 = vsub.f32 %v331, %v523
        %v684 = vsub.f32 %v332, %v524
        %v685 = vsub.f32 %v333, %v525
        %v686 = vsub.f32 %v334, %v526
        %v687 = vsub.f32 %v335, %v527
        %v688 = vsub.f32 %v336, %v528
        %v689 = vsub.f32 %v337, %v529
        %v690 = vsub.f32 %v338, %v530
        %v691 = vsub.f32 %v339, %v531
        %v692 = vsub.f32 %v340, %v532
        %v693 = vsub.f32 %v341, %v533
        %v694 = vsub.f32 %v342, %v534
        %v695 = vsub.f32 %v343, %v535
        %v696 = vsub.f32 %v344, %v536
        %v697 = vsub.f32 %v345, %v537
        %v698 = vsub.f32 %v346, %v538
        %v699 = vsub.f32 %v347, %v539
        %v700 = vsub.f32 %v348, %v540
        %v701 = vsub.f32 %v349, %v541
        %v702 = vsub.f32 %v350, %v542
        %v703 = vsub.f32 %v351, %v543
        %v704 = vsub.f32 %v352, %v544
        %v705 = vsub.f32 %v353, %v545
        %v706 = vsub.f32 %v354, %v546
        %v707 = vsub.f32 %v355, %v547
        %v708 = vsub.f32 %v356, %v548
        %v709 = vsub.f32 %v357, %v549
        %v710 = vsub.f32 %v358, %v550
        %v711 = vsub.f32 %v359, %v551
        %v712 = vsub.f32 %v360, %v552
        %v713 = vadd.f32 %v649, 1e-06
        %v714 = vadd.f32 %v650, 1e-06
        %v715 = vadd.f32 %v651, 1e-06
        %v716 = vadd.f32 %v652, 1e-06
        %v717 = vadd.f32 %v653, 1e-06
        %v718 = vadd.f32 %v654, 1e-06
        %v719 = vadd.f32 %v655, 1e-06
        %v720 = vadd.f32 %v656, 1e-06
        %v721 = vadd.f32 %v657, 1e-06
        %v722 = vadd.f32 %v658, 1e-06
        %v723 = vadd.f32 %v659, 1e-06
        %v724 = vadd.f32 %v660, 1e-06
        %v725 = vadd.f32 %v661, 1e-06
        %v726 = vadd.f32 %v662, 1e-06
        %v727 = vadd.f32 %v663, 1e-06
        %v728 = vadd.f32 %v664, 1e-06
        %v729 = vadd.f32 %v665, 1e-06
        %v730 = vadd.f32 %v666, 1e-06
        %v731 = vadd.f32 %v667, 1e-06
        %v732 = vadd.f32 %v668, 1e-06
        %v733 = vadd.f32 %v669, 1e-06
        %v734 = vadd.f32 %v670, 1e-06
        %v735 = vadd.f32 %v671, 1e-06
        %v736 = vadd.f32 %v672, 1e-06
        %v737 = vadd.f32 %v673, 1e-06
        %v738 = vadd.f32 %v674, 1e-06
        %v739 = vadd.f32 %v675, 1e-06
        %v740 = vadd.f32 %v676, 1e-06
        %v741 = vadd.f32 %v677, 1e-06
        %v742 = vadd.f32 %v678, 1e-06
        %v743 = vadd.f32 %v679, 1e-06
        %v744 = vadd.f32 %v680, 1e-06
        %v745 = vrsqrt.pop %v713
        %v746 = vrsqrt.pop %v714
        %v747 = vrsqrt.pop %v715
        %v748 = vrsqrt.pop %v716
        %v749 = vrsqrt.pop %v717
        %v750 = vrsqrt.pop %v718
        %v751 = vrsqrt.pop %v719
        %v752 = vrsqrt.pop %v720
        %v753 = vrsqrt.pop %v721
        %v754 = vrsqrt.pop %v722
        %v755 = vrsqrt.pop %v723
        %v756 = vrsqrt.pop %v724
        %v757 = vrsqrt.pop %v725
        %v758 = vrsqrt.pop %v726
        %v759 = vrsqrt.pop %v727
        %v760 = vrsqrt.pop %v728
        %v761 = vrsqrt.pop %v729
        %v762 = vrsqrt.pop %v730
        %v763 = vrsqrt.pop %v731
        %v764 = vrsqrt.pop %v732
        %v765 = vrsqrt.pop %v733
        %v766 = vrsqrt.pop %v734
        %v767 = vrsqrt.pop %v735
        %v768 = vrsqrt.pop %v736
        %v769 = vrsqrt.pop %v737
        %v770 = vrsqrt.pop %v738
        %v771 = vrsqrt.pop %v739
        %v772 = vrsqrt.pop %v740
        %v773 = vrsqrt.pop %v741
        %v774 = vrsqrt.pop %v742
        %v775 = vrsqrt.pop %v743
        %v776 = vrsqrt.pop %v744
        %v777 = vmul.f32 %v681, %v745
        %v778 = vmul.f32 %v682, %v746
        %v779 = vmul.f32 %v683, %v747
        %v780 = vmul.f32 %v684, %v748
        %v781 = vmul.f32 %v685, %v749
        %v782 = vmul.f32 %v686, %v750
        %v783 = vmul.f32 %v687, %v751
        %v784 = vmul.f32 %v688, %v752
        %v785 = vmul.f32 %v689, %v753
        %v786 = vmul.f32 %v690, %v754
        %v787 = vmul.f32 %v691, %v755
        %v788 = vmul.f32 %v692, %v756
        %v789 = vmul.f32 %v693, %v757
        %v790 = vmul.f32 %v694, %v758
        %v791 = vmul.f32 %v695, %v759
        %v792 = vmul.f32 %v696, %v760
        %v793 = vmul.f32 %v697, %v761
        %v794 = vmul.f32 %v698, %v762
        %v795 = vmul.f32 %v699, %v763
        %v796 = vmul.f32 %v700, %v764
        %v797 = vmul.f32 %v701, %v765
        %v798 = vmul.f32 %v702, %v766
        %v799 = vmul.f32 %v703, %v767
        %v800 = vmul.f32 %v704, %v768
        %v801 = vmul.f32 %v705, %v769
        %v802 = vmul.f32 %v706, %v770
        %v803 = vmul.f32 %v707, %v771
        %v804 = vmul.f32 %v708, %v772
        %v805 = vmul.f32 %v709, %v773
        %v806 = vmul.f32 %v710, %v774
        %v807 = vmul.f32 %v711, %v775
        %v808 = vmul.f32 %v712, %v776
        %v809 = vld [vmem:[%s1] sm:$0x1]
        %v811 = vlaneseq
        %v812 = vshrl.u32 %v811, 7
        %v813 = vsub.s32 0, %v812
        %v814 = vrot.slane %v809, %v813
        %v816 = vmul.f32 %v777, %v814
        %v817 = vmul.f32 %v778, %v814
        %v818 = vmul.f32 %v779, %v814
        %v819 = vmul.f32 %v780, %v814
        %v820 = vmul.f32 %v781, %v814
        %v821 = vmul.f32 %v782, %v814
        %v822 = vmul.f32 %v783, %v814
        %v823 = vmul.f32 %v784, %v814
        %v824 = vmul.f32 %v785, %v814
        %v825 = vmul.f32 %v786, %v814
        %v826 = vmul.f32 %v787, %v814
        %v827 = vmul.f32 %v788, %v814
        %v828 = vmul.f32 %v789, %v814
        %v829 = vmul.f32 %v790, %v814
        %v830 = vmul.f32 %v791, %v814
        %v831 = vmul.f32 %v792, %v814
        %v832 = vmul.f32 %v793, %v814
        %v833 = vmul.f32 %v794, %v814
        %v834 = vmul.f32 %v795, %v814
        %v835 = vmul.f32 %v796, %v814
        %v836 = vmul.f32 %v797, %v814
        %v837 = vmul.f32 %v798, %v814
        %v838 = vmul.f32 %v799, %v814
        %v839 = vmul.f32 %v800, %v814
        %v840 = vmul.f32 %v801, %v814
        %v841 = vmul.f32 %v802, %v814
        %v842 = vmul.f32 %v803, %v814
        %v843 = vmul.f32 %v804, %v814
        %v844 = vmul.f32 %v805, %v814
        %v845 = vmul.f32 %v806, %v814
        %v846 = vmul.f32 %v807, %v814
        %v847 = vmul.f32 %v808, %v814
        %v848 = vld [vmem:[%s2] sm:$0x1]
        %v850 = vlaneseq
        %v851 = vshrl.u32 %v850, 7
        %v852 = vsub.s32 0, %v851
        %v853 = vrot.slane %v848, %v852
        %v855 = vadd.f32 %v816, %v853
        %v856 = vadd.f32 %v817, %v853
        %v857 = vadd.f32 %v818, %v853
        %v858 = vadd.f32 %v819, %v853
        %v859 = vadd.f32 %v820, %v853
        %v860 = vadd.f32 %v821, %v853
        %v861 = vadd.f32 %v822, %v853
        %v862 = vadd.f32 %v823, %v853
        %v863 = vadd.f32 %v824, %v853
        %v864 = vadd.f32 %v825, %v853
        %v865 = vadd.f32 %v826, %v853
        %v866 = vadd.f32 %v827, %v853
        %v867 = vadd.f32 %v828, %v853
        %v868 = vadd.f32 %v829, %v853
        %v869 = vadd.f32 %v830, %v853
        %v870 = vadd.f32 %v831, %v853
        %v871 = vadd.f32 %v832, %v853
        %v872 = vadd.f32 %v833, %v853
        %v873 = vadd.f32 %v834, %v853
        %v874 = vadd.f32 %v835, %v853
        %v875 = vadd.f32 %v836, %v853
        %v876 = vadd.f32 %v837, %v853
        %v877 = vadd.f32 %v838, %v853
        %v878 = vadd.f32 %v839, %v853
        %v879 = vadd.f32 %v840, %v853
        %v880 = vadd.f32 %v841, %v853
        %v881 = vadd.f32 %v842, %v853
        %v882 = vadd.f32 %v843, %v853
        %v883 = vadd.f32 %v844, %v853
        %v884 = vadd.f32 %v845, %v853
        %v885 = vadd.f32 %v846, %v853
        %v886 = vadd.f32 %v847, %v853
        %v887 = vld [vmem:[#allocation5] sm:$0xff]
        %v888 = vld [vmem:[#allocation5 + $0x8] sm:$0xff]
        %v889 = vld [vmem:[#allocation5 + $0x10] sm:$0xff]
        %v890 = vld [vmem:[#allocation5 + $0x18] sm:$0xff]
        %v891 = vld [vmem:[#allocation5 + $0x20] sm:$0xff]
        %v892 = vld [vmem:[#allocation5 + $0x28] sm:$0xff]
        %v893 = vld [vmem:[#allocation5 + $0x30] sm:$0xff]
        %v894 = vld [vmem:[#allocation5 + $0x38] sm:$0xff]
        %v895 = vld [vmem:[#allocation5 + $0x40] sm:$0xff]
        %v896 = vld [vmem:[#allocation5 + $0x48] sm:$0xff]
        %v897 = vld [vmem:[#allocation5 + $0x50] sm:$0xff]
        %v898 = vld [vmem:[#allocation5 + $0x58] sm:$0xff]
        %v899 = vld [vmem:[#allocation5 + $0x60] sm:$0xff]
        %v900 = vld [vmem:[#allocation5 + $0x68] sm:$0xff]
        %v901 = vld [vmem:[#allocation5 + $0x70] sm:$0xff]
        %v902 = vld [vmem:[#allocation5 + $0x78] sm:$0xff]
        %v903 = vld [vmem:[%s4] sm:$0x3]
        %v904 = vld [vmem:[#allocation7] sm:$0xf]
        %v905 = vld [vmem:[#allocation7 + $0x4] sm:$0xf]
        %v906 = vld [vmem:[#allocation7 + $0x8] sm:$0xf]
        %v907 = vld [vmem:[#allocation7 + $0xc] sm:$0xf]
        %v908 = vld [vmem:[#allocation7 + $0x10] sm:$0xf]
        %v909 = vld [vmem:[#allocation7 + $0x14] sm:$0xf]
        %v910 = vld [vmem:[#allocation7 + $0x18] sm:$0xf]
        %v911 = vld [vmem:[#allocation7 + $0x1c] sm:$0xf]
        %v912 = vld [vmem:[#allocation7 + $0x20] sm:$0xf]
        %v913 = vld [vmem:[#allocation7 + $0x24] sm:$0xf]
        %v914 = vld [vmem:[#allocation7 + $0x28] sm:$0xf]
        %v915 = vld [vmem:[#allocation7 + $0x2c] sm:$0xf]
        %v916 = vld [vmem:[#allocation7 + $0x30] sm:$0xf]
        %v917 = vld [vmem:[#allocation7 + $0x34] sm:$0xf]
        %v918 = vld [vmem:[#allocation7 + $0x38] sm:$0xf]
        %v919 = vld [vmem:[#allocation7 + $0x3c] sm:$0xf]
        %v920 = vld [vmem:[#allocation7 + $0x40] sm:$0xf]
        %v921 = vld [vmem:[#allocation7 + $0x44] sm:$0xf]
        %v922 = vld [vmem:[#allocation7 + $0x48] sm:$0xf]
        %v923 = vld [vmem:[#allocation7 + $0x4c] sm:$0xf]
        %v924 = vld [vmem:[#allocation7 + $0x50] sm:$0xf]
        %v925 = vld [vmem:[#allocation7 + $0x54] sm:$0xf]
        %v926 = vld [vmem:[#allocation7 + $0x58] sm:$0xf]
        %v927 = vld [vmem:[#allocation7 + $0x5c] sm:$0xf]
        %v928 = vld [vmem:[#allocation7 + $0x60] sm:$0xf]
        %v929 = vld [vmem:[#allocation7 + $0x64] sm:$0xf]
        %v930 = vld [vmem:[#allocation7 + $0x68] sm:$0xf]
        %v931 = vld [vmem:[#allocation7 + $0x6c] sm:$0xf]
        %v932 = vld [vmem:[#allocation7 + $0x70] sm:$0xf]
        %v933 = vld [vmem:[#allocation7 + $0x74] sm:$0xf]
        %v934 = vld [vmem:[#allocation7 + $0x78] sm:$0xf]
        %v935 = vld [vmem:[#allocation7 + $0x7c] sm:$0xf]
        %v936 = vld [vmem:[%s6] sm:$0x1]
        %v937 = vpack.c.bf16 %v856, %v855
        %v938 = vpack.c.bf16 %v858, %v857
        %v939 = vpack.c.bf16 %v860, %v859
        %v940 = vpack.c.bf16 %v862, %v861
        %v941 = vpack.c.bf16 %v864, %v863
        %v942 = vpack.c.bf16 %v866, %v865
        %v943 = vpack.c.bf16 %v868, %v867
        %v944 = vpack.c.bf16 %v870, %v869
        %v945 = vpack.c.bf16 %v872, %v871
        %v946 = vpack.c.bf16 %v874, %v873
        %v947 = vpack.c.bf16 %v876, %v875
        %v948 = vpack.c.bf16 %v878, %v877
        %v949 = vpack.c.bf16 %v880, %v879
        %v950 = vpack.c.bf16 %v882, %v881
        %v951 = vpack.c.bf16 %v884, %v883
        %v952 = vpack.c.bf16 %v886, %v885
        %v954 = vlaneseq
        %v955 = vshrl.u32 %v954, 7
        %v956 = vsub.s32 0, %v955
        %v957 = vrot.slane %v903, %v956
        %v958 = vlaneseq
        %v959 = vshrl.u32 %v958, 7
        %v960 = vsub.s32 1, %v959
        %v961 = vrot.slane %v903, %v960
        %v980 = vunpack.c.l.b16 %v887
        %v981 = vunpack.c.h.b16 %v887
        %v982 = vunpack.c.l.b16 %v888
        %v983 = vunpack.c.h.b16 %v888
        %v984 = vunpack.c.l.b16 %v889
        %v985 = vunpack.c.h.b16 %v889
        %v986 = vunpack.c.l.b16 %v890
        %v987 = vunpack.c.h.b16 %v890
        %v988 = vunpack.c.l.b16 %v891
        %v989 = vunpack.c.h.b16 %v891
        %v990 = vunpack.c.l.b16 %v892
        %v991 = vunpack.c.h.b16 %v892
        %v992 = vunpack.c.l.b16 %v893
        %v993 = vunpack.c.h.b16 %v893
        %v994 = vunpack.c.l.b16 %v894
        %v995 = vunpack.c.h.b16 %v894
        %v996 = vunpack.c.l.b16 %v895
        %v997 = vunpack.c.h.b16 %v895
        %v998 = vunpack.c.l.b16 %v896
        %v999 = vunpack.c.h.b16 %v896
        %v1000 = vunpack.c.l.b16 %v897
        %v1001 = vunpack.c.h.b16 %v897
        %v1002 = vunpack.c.l.b16 %v898
        %v1003 = vunpack.c.h.b16 %v898
        %v1004 = vunpack.c.l.b16 %v899
        %v1005 = vunpack.c.h.b16 %v899
        %v1006 = vunpack.c.l.b16 %v900
        %v1007 = vunpack.c.h.b16 %v900
        %v1008 = vunpack.c.l.b16 %v901
        %v1009 = vunpack.c.h.b16 %v901
        %v1010 = vunpack.c.l.b16 %v902
        %v1011 = vunpack.c.h.b16 %v902
        %v1012 = vpack.c.b16 %v982, %v980
        %v1013 = vpack.c.b16 %v983, %v981
        %v1014 = vpack.c.b16 %v986, %v984
        %v1015 = vpack.c.b16 %v987, %v985
        %v1016 = vpack.c.b16 %v990, %v988
        %v1017 = vpack.c.b16 %v991, %v989
        %v1018 = vpack.c.b16 %v994, %v992
        %v1019 = vpack.c.b16 %v995, %v993
        %v1020 = vpack.c.b16 %v998, %v996
        %v1021 = vpack.c.b16 %v999, %v997
        %v1022 = vpack.c.b16 %v1002, %v1000
        %v1023 = vpack.c.b16 %v1003, %v1001
        %v1024 = vpack.c.b16 %v1006, %v1004
        %v1025 = vpack.c.b16 %v1007, %v1005
        %v1026 = vpack.c.b16 %v1010, %v1008
        %v1027 = vpack.c.b16 %v1011, %v1009
        %1044 = vmatprep.subr.bf16.mxu0 %v1013
        %1045 = vmatpush1.bf16.msra.mxu0 %v1012
        %1046 = vmatprep.subr.bf16.mxu0 %v1015
        %1047 = vmatpush1.bf16.msra.mxu0 %v1014
        %1048 = vmatprep.subr.bf16.mxu0 %v1017
        %1049 = vmatpush1.bf16.msra.mxu0 %v1016
        %1050 = vmatprep.subr.bf16.mxu0 %v1019
        %1051 = vmatpush1.bf16.msra.mxu0 %v1018
        %1052 = vmatprep.subr.bf16.mxu0 %v1021
        %1053 = vmatpush1.bf16.msra.mxu0 %v1020
        %1054 = vmatprep.subr.bf16.mxu0 %v1023
        %1055 = vmatpush1.bf16.msra.mxu0 %v1022
        %1056 = vmatprep.subr.bf16.mxu0 %v1025
        %1057 = vmatpush1.bf16.msra.mxu0 %v1024
        %1058 = vmatprep.subr.bf16.mxu0 %v1027
        %1059 = vmatpush1.bf16.msra.mxu0 %v1026
        %1060 = vmatprep.subr.bf16.mxu0 0
        %1061 = vmatpush1.bf16.msra.mxu0 0
        %1062 = vmatprep.subr.bf16.mxu0 0
        %1063 = vmatpush1.bf16.msra.mxu0 0
        %1064 = vmatprep.subr.bf16.mxu0 0
        %1065 = vmatpush1.bf16.msra.mxu0 0
        %1066 = vmatprep.subr.bf16.mxu0 0
        %1067 = vmatpush1.bf16.msra.mxu0 0
        %1068 = vmatprep.subr.bf16.mxu0 0
        %1069 = vmatpush1.bf16.msra.mxu0 0
        %1070 = vmatprep.subr.bf16.mxu0 0
        %1071 = vmatpush1.bf16.msra.mxu0 0
        %1072 = vmatprep.subr.bf16.mxu0 0
        %1073 = vmatpush1.bf16.msra.mxu0 0
        %1074 = vmatprep.subr.bf16.mxu0 0
        %1075 = vmatpush1.bf16.msra.mxu0 0
        %1076 = vmatprep.mubr.bf16.mxu0 0
        %1077 = vmatmul.mubr.bf16.gmra.mrb[0].mxu0 %v937
        %v1078 = vpop.f32.mrb[0].mxu0
        %v1079 = vadd.f32 %v957, %v1078
        %v1080 = vpop.f32.mrb[0].mxu0
        %v1081 = vadd.f32 %v961, %v1080
        %v1082 = vpop.f32.mrb[0].mxu0
        %v1083 = vadd.f32 %v957, %v1082
        %v1084 = vpop.f32.mrb[0].mxu0
        %v1085 = vadd.f32 %v961, %v1084
        %1086 = vmatprep.mubr.bf16.mxu0 0
        %1087 = vmatmul.mubr.bf16.gmra.mrb[0].mxu0 %v938
        %v1088 = vpop.f32.mrb[0].mxu0
        %v1089 = vadd.f32 %v957, %v1088
        %v1090 = vpop.f32.mrb[0].mxu0
        %v1091 = vadd.f32 %v961, %v1090
        %v1092 = vpop.f32.mrb[0].mxu0
        %v1093 = vadd.f32 %v957, %v1092
        %v1094 = vpop.f32.mrb[0].mxu0
        %v1095 = vadd.f32 %v961, %v1094
        %1096 = vmatprep.mubr.bf16.mxu0 0
        %1097 = vmatmul.mubr.bf16.gmra.mrb[0].mxu0 %v939
        %v1098 = vpop.f32.mrb[0].mxu0
        %v1099 = vadd.f32 %v957, %v1098
        %v1100 = vpop.f32.mrb[0].mxu0
        %v1101 = vadd.f32 %v961, %v1100
        %v1102 = vpop.f32.mrb[0].mxu0
        %v1103 = vadd.f32 %v957, %v1102
        %v1104 = vpop.f32.mrb[0].mxu0
        %v1105 = vadd.f32 %v961, %v1104
        %1106 = vmatprep.mubr.bf16.mxu0 0
        %1107 = vmatmul.mubr.bf16.gmra.mrb[0].mxu0 %v940
        %v1108 = vpop.f32.mrb[0].mxu0
        %v1109 = vadd.f32 %v957, %v1108
        %v1110 = vpop.f32.mrb[0].mxu0
        %v1111 = vadd.f32 %v961, %v1110
        %v1112 = vpop.f32.mrb[0].mxu0
        %v1113 = vadd.f32 %v957, %v1112
        %v1114 = vpop.f32.mrb[0].mxu0
        %v1115 = vadd.f32 %v961, %v1114
        %1116 = vmatprep.mubr.bf16.mxu0 0
        %1117 = vmatmul.mubr.bf16.gmra.mrb[0].mxu0 %v941
        %v1118 = vpop.f32.mrb[0].mxu0
        %v1119 = vadd.f32 %v957, %v1118
        %v1120 = vpop.f32.mrb[0].mxu0
        %v1121 = vadd.f32 %v961, %v1120
        %v1122 = vpop.f32.mrb[0].mxu0
        %v1123 = vadd.f32 %v957, %v1122
        %v1124 = vpop.f32.mrb[0].mxu0
        %v1125 = vadd.f32 %v961, %v1124
        %1126 = vmatprep.mubr.bf16.mxu0 0
        %1127 = vmatmul.mubr.bf16.gmra.mrb[0].mxu0 %v942
        %v1128 = vpop.f32.mrb[0].mxu0
        %v1129 = vadd.f32 %v957, %v1128
        %v1130 = vpop.f32.mrb[0].mxu0
        %v1131 = vadd.f32 %v961, %v1130
        %v1132 = vpop.f32.mrb[0].mxu0
        %v1133 = vadd.f32 %v957, %v1132
        %v1134 = vpop.f32.mrb[0].mxu0
        %v1135 = vadd.f32 %v961, %v1134
        %1136 = vmatprep.mubr.bf16.mxu0 0
        %1137 = vmatmul.mubr.bf16.gmra.mrb[0].mxu0 %v943
        %v1138 = vpop.f32.mrb[0].mxu0
        %v1139 = vadd.f32 %v957, %v1138
        %v1140 = vpop.f32.mrb[0].mxu0
        %v1141 = vadd.f32 %v961, %v1140
        %v1142 = vpop.f32.mrb[0].mxu0
        %v1143 = vadd.f32 %v957, %v1142
        %v1144 = vpop.f32.mrb[0].mxu0
        %v1145 = vadd.f32 %v961, %v1144
        %1146 = vmatprep.mubr.bf16.mxu0 0
        %1147 = vmatmul.mubr.bf16.gmra.mrb[0].mxu0 %v944
        %v1148 = vpop.f32.mrb[0].mxu0
        %v1149 = vadd.f32 %v957, %v1148
        %v1150 = vpop.f32.mrb[0].mxu0
        %v1151 = vadd.f32 %v961, %v1150
        %v1152 = vpop.f32.mrb[0].mxu0
        %v1153 = vadd.f32 %v957, %v1152
        %v1154 = vpop.f32.mrb[0].mxu0
        %v1155 = vadd.f32 %v961, %v1154
        %1156 = vmatprep.mubr.bf16.mxu0 0
        %1157 = vmatmul.mubr.bf16.gmra.mrb[0].mxu0 %v945
        %v1158 = vpop.f32.mrb[0].mxu0
        %v1159 = vadd.f32 %v957, %v1158
        %v1160 = vpop.f32.mrb[0].mxu0
        %v1161 = vadd.f32 %v961, %v1160
        %v1162 = vpop.f32.mrb[0].mxu0
        %v1163 = vadd.f32 %v957, %v1162
        %v1164 = vpop.f32.mrb[0].mxu0
        %v1165 = vadd.f32 %v961, %v1164
        %1166 = vmatprep.mubr.bf16.mxu0 0
        %1167 = vmatmul.mubr.bf16.gmra.mrb[0].mxu0 %v946
        %v1168 = vpop.f32.mrb[0].mxu0
        %v1169 = vadd.f32 %v957, %v1168
        %v1170 = vpop.f32.mrb[0].mxu0
        %v1171 = vadd.f32 %v961, %v1170
        %v1172 = vpop.f32.mrb[0].mxu0
        %v1173 = vadd.f32 %v957, %v1172
        %v1174 = vpop.f32.mrb[0].mxu0
        %v1175 = vadd.f32 %v961, %v1174
        %1176 = vmatprep.mubr.bf16.mxu0 0
        %1177 = vmatmul.mubr.bf16.gmra.mrb[0].mxu0 %v947
        %v1178 = vpop.f32.mrb[0].mxu0
        %v1179 = vadd.f32 %v957, %v1178
        %v1180 = vpop.f32.mrb[0].mxu0
        %v1181 = vadd.f32 %v961, %v1180
        %v1182 = vpop.f32.mrb[0].mxu0
        %v1183 = vadd.f32 %v957, %v1182
        %v1184 = vpop.f32.mrb[0].mxu0
        %v1185 = vadd.f32 %v961, %v1184
        %1186 = vmatprep.mubr.bf16.mxu0 0
        %1187 = vmatmul.mubr.bf16.gmra.mrb[0].mxu0 %v948
        %v1188 = vpop.f32.mrb[0].mxu0
        %v1189 = vadd.f32 %v957, %v1188
        %v1190 = vpop.f32.mrb[0].mxu0
        %v1191 = vadd.f32 %v961, %v1190
        %v1192 = vpop.f32.mrb[0].mxu0
        %v1193 = vadd.f32 %v957, %v1192
        %v1194 = vpop.f32.mrb[0].mxu0
        %v1195 = vadd.f32 %v961, %v1194
        %1196 = vmatprep.mubr.bf16.mxu0 0
        %1197 = vmatmul.mubr.bf16.gmra.mrb[0].mxu0 %v949
        %v1198 = vpop.f32.mrb[0].mxu0
        %v1199 = vadd.f32 %v957, %v1198
        %v1200 = vpop.f32.mrb[0].mxu0
        %v1201 = vadd.f32 %v961, %v1200
        %v1202 = vpop.f32.mrb[0].mxu0
        %v1203 = vadd.f32 %v957, %v1202
        %v1204 = vpop.f32.mrb[0].mxu0
        %v1205 = vadd.f32 %v961, %v1204
        %1206 = vmatprep.mubr.bf16.mxu0 0
        %1207 = vmatmul.mubr.bf16.gmra.mrb[0].mxu0 %v950
        %v1208 = vpop.f32.mrb[0].mxu0
        %v1209 = vadd.f32 %v957, %v1208
        %v1210 = vpop.f32.mrb[0].mxu0
        %v1211 = vadd.f32 %v961, %v1210
        %v1212 = vpop.f32.mrb[0].mxu0
        %v1213 = vadd.f32 %v957, %v1212
        %v1214 = vpop.f32.mrb[0].mxu0
        %v1215 = vadd.f32 %v961, %v1214
        %1216 = vmatprep.mubr.bf16.mxu0 0
        %1217 = vmatmul.mubr.bf16.gmra.mrb[0].mxu0 %v951
        %v1218 = vpop.f32.mrb[0].mxu0
        %v1219 = vadd.f32 %v957, %v1218
        %v1220 = vpop.f32.mrb[0].mxu0
        %v1221 = vadd.f32 %v961, %v1220
        %v1222 = vpop.f32.mrb[0].mxu0
        %v1223 = vadd.f32 %v957, %v1222
        %v1224 = vpop.f32.mrb[0].mxu0
        %v1225 = vadd.f32 %v961, %v1224
        %1226 = vmatprep.mubr.bf16.mxu0 0
        %1227 = vmatmul.mubr.bf16.gmra.mrb[0].mxu0 %v952
        %v1228 = vpop.f32.mrb[0].mxu0
        %v1229 = vadd.f32 %v957, %v1228
        %v1230 = vpop.f32.mrb[0].mxu0
        %v1231 = vadd.f32 %v961, %v1230
        %v1232 = vpop.f32.mrb[0].mxu0
        %v1233 = vadd.f32 %v957, %v1232
        %v1234 = vpop.f32.mrb[0].mxu0
        %v1235 = vadd.f32 %v961, %v1234
        %1236 = vdwg.mxu0
        %v1237 = vmax.f32 %v1079, 0.0
        %v1238 = vmax.f32 %v1081, 0.0
        %v1239 = vmax.f32 %v1083, 0.0
        %v1240 = vmax.f32 %v1085, 0.0
        %v1241 = vmax.f32 %v1089, 0.0
        %v1242 = vmax.f32 %v1091, 0.0
        %v1243 = vmax.f32 %v1093, 0.0
        %v1244 = vmax.f32 %v1095, 0.0
        %v1245 = vmax.f32 %v1099, 0.0
        %v1246 = vmax.f32 %v1101, 0.0
        %v1247 = vmax.f32 %v1103, 0.0
        %v1248 = vmax.f32 %v1105, 0.0
        %v1249 = vmax.f32 %v1109, 0.0
        %v1250 = vmax.f32 %v1111, 0.0
        %v1251 = vmax.f32 %v1113, 0.0
        %v1252 = vmax.f32 %v1115, 0.0
        %v1253 = vmax.f32 %v1119, 0.0
        %v1254 = vmax.f32 %v1121, 0.0
        %v1255 = vmax.f32 %v1123, 0.0
        %v1256 = vmax.f32 %v1125, 0.0
        %v1257 = vmax.f32 %v1129, 0.0
        %v1258 = vmax.f32 %v1131, 0.0
        %v1259 = vmax.f32 %v1133, 0.0
        %v1260 = vmax.f32 %v1135, 0.0
        %v1261 = vmax.f32 %v1139, 0.0
        %v1262 = vmax.f32 %v1141, 0.0
        %v1263 = vmax.f32 %v1143, 0.0
        %v1264 = vmax.f32 %v1145, 0.0
        %v1265 = vmax.f32 %v1149, 0.0
        %v1266 = vmax.f32 %v1151, 0.0
        %v1267 = vmax.f32 %v1153, 0.0
        %v1268 = vmax.f32 %v1155, 0.0
        %v1269 = vmax.f32 %v1159, 0.0
        %v1270 = vmax.f32 %v1161, 0.0
        %v1271 = vmax.f32 %v1163, 0.0
        %v1272 = vmax.f32 %v1165, 0.0
        %v1273 = vmax.f32 %v1169, 0.0
        %v1274 = vmax.f32 %v1171, 0.0
        %v1275 = vmax.f32 %v1173, 0.0
        %v1276 = vmax.f32 %v1175, 0.0
        %v1277 = vmax.f32 %v1179, 0.0
        %v1278 = vmax.f32 %v1181, 0.0
        %v1279 = vmax.f32 %v1183, 0.0
        %v1280 = vmax.f32 %v1185, 0.0
        %v1281 = vmax.f32 %v1189, 0.0
        %v1282 = vmax.f32 %v1191, 0.0
        %v1283 = vmax.f32 %v1193, 0.0
        %v1284 = vmax.f32 %v1195, 0.0
        %v1285 = vmax.f32 %v1199, 0.0
        %v1286 = vmax.f32 %v1201, 0.0
        %v1287 = vmax.f32 %v1203, 0.0
        %v1288 = vmax.f32 %v1205, 0.0
        %v1289 = vmax.f32 %v1209, 0.0
        %v1290 = vmax.f32 %v1211, 0.0
        %v1291 = vmax.f32 %v1213, 0.0
        %v1292 = vmax.f32 %v1215, 0.0
        %v1293 = vmax.f32 %v1219, 0.0
        %v1294 = vmax.f32 %v1221, 0.0
        %v1295 = vmax.f32 %v1223, 0.0
        %v1296 = vmax.f32 %v1225, 0.0
        %v1297 = vmax.f32 %v1229, 0.0
        %v1298 = vmax.f32 %v1231, 0.0
        %v1299 = vmax.f32 %v1233, 0.0
        %v1300 = vmax.f32 %v1235, 0.0
        %v1301 = vpack.c.bf16 %v1239, %v1237
        %v1302 = vpack.c.bf16 %v1240, %v1238
        %v1303 = vpack.c.bf16 %v1243, %v1241
        %v1304 = vpack.c.bf16 %v1244, %v1242
        %v1305 = vpack.c.bf16 %v1247, %v1245
        %v1306 = vpack.c.bf16 %v1248, %v1246
        %v1307 = vpack.c.bf16 %v1251, %v1249
        %v1308 = vpack.c.bf16 %v1252, %v1250
        %v1309 = vpack.c.bf16 %v1255, %v1253
        %v1310 = vpack.c.bf16 %v1256, %v1254
        %v1311 = vpack.c.bf16 %v1259, %v1257
        %v1312 = vpack.c.bf16 %v1260, %v1258
        %v1313 = vpack.c.bf16 %v1263, %v1261
        %v1314 = vpack.c.bf16 %v1264, %v1262
        %v1315 = vpack.c.bf16 %v1267, %v1265
        %v1316 = vpack.c.bf16 %v1268, %v1266
        %v1317 = vpack.c.bf16 %v1271, %v1269
        %v1318 = vpack.c.bf16 %v1272, %v1270
        %v1319 = vpack.c.bf16 %v1275, %v1273
        %v1320 = vpack.c.bf16 %v1276, %v1274
        %v1321 = vpack.c.bf16 %v1279, %v1277
        %v1322 = vpack.c.bf16 %v1280, %v1278
        %v1323 = vpack.c.bf16 %v1283, %v1281
        %v1324 = vpack.c.bf16 %v1284, %v1282
        %v1325 = vpack.c.bf16 %v1287, %v1285
        %v1326 = vpack.c.bf16 %v1288, %v1286
        %v1327 = vpack.c.bf16 %v1291, %v1289
        %v1328 = vpack.c.bf16 %v1292, %v1290
        %v1329 = vpack.c.bf16 %v1295, %v1293
        %v1330 = vpack.c.bf16 %v1296, %v1294
        %v1331 = vpack.c.bf16 %v1299, %v1297
        %v1332 = vpack.c.bf16 %v1300, %v1298
        %v1334 = vlaneseq
        %v1335 = vshrl.u32 %v1334, 7
        %v1336 = vsub.s32 0, %v1335
        %v1337 = vrot.slane %v936, %v1336
        %v1371 = vunpack.c.l.b16 %v904
        %v1372 = vunpack.c.l.b16 %v905
        %v1373 = vunpack.c.l.b16 %v906
        %v1374 = vunpack.c.l.b16 %v907
        %v1375 = vunpack.c.l.b16 %v908
        %v1376 = vunpack.c.l.b16 %v909
        %v1377 = vunpack.c.l.b16 %v910
        %v1378 = vunpack.c.l.b16 %v911
        %v1379 = vunpack.c.l.b16 %v912
        %v1380 = vunpack.c.l.b16 %v913
        %v1381 = vunpack.c.l.b16 %v914
        %v1382 = vunpack.c.l.b16 %v915
        %v1383 = vunpack.c.l.b16 %v916
        %v1384 = vunpack.c.l.b16 %v917
        %v1385 = vunpack.c.l.b16 %v918
        %v1386 = vunpack.c.l.b16 %v919
        %v1387 = vunpack.c.l.b16 %v920
        %v1388 = vunpack.c.l.b16 %v921
        %v1389 = vunpack.c.l.b16 %v922
        %v1390 = vunpack.c.l.b16 %v923
        %v1391 = vunpack.c.l.b16 %v924
        %v1392 = vunpack.c.l.b16 %v925
        %v1393 = vunpack.c.l.b16 %v926
        %v1394 = vunpack.c.l.b16 %v927
        %v1395 = vunpack.c.l.b16 %v928
        %v1396 = vunpack.c.l.b16 %v929
        %v1397 = vunpack.c.l.b16 %v930
        %v1398 = vunpack.c.l.b16 %v931
        %v1399 = vunpack.c.l.b16 %v932
        %v1400 = vunpack.c.l.b16 %v933
        %v1401 = vunpack.c.l.b16 %v934
        %v1402 = vunpack.c.l.b16 %v935
        %v1403 = vpack.c.b16 %v1372, %v1371
        %v1404 = vpack.c.b16 %v1374, %v1373
        %v1405 = vpack.c.b16 %v1376, %v1375
        %v1406 = vpack.c.b16 %v1378, %v1377
        %v1407 = vpack.c.b16 %v1380, %v1379
        %v1408 = vpack.c.b16 %v1382, %v1381
        %v1409 = vpack.c.b16 %v1384, %v1383
        %v1410 = vpack.c.b16 %v1386, %v1385
        %v1411 = vpack.c.b16 %v1388, %v1387
        %v1412 = vpack.c.b16 %v1390, %v1389
        %v1413 = vpack.c.b16 %v1392, %v1391
        %v1414 = vpack.c.b16 %v1394, %v1393
        %v1415 = vpack.c.b16 %v1396, %v1395
        %v1416 = vpack.c.b16 %v1398, %v1397
        %v1417 = vpack.c.b16 %v1400, %v1399
        %v1418 = vpack.c.b16 %v1402, %v1401
        %1435 = vmatprep.subr.bf16.mxu0 0
        %1436 = vmatpush1.bf16.msra.mxu0 %v1403
        %1437 = vmatprep.subr.bf16.mxu0 0
        %1438 = vmatpush1.bf16.msra.mxu0 %v1404
        %1439 = vmatprep.subr.bf16.mxu0 0
        %1440 = vmatpush1.bf16.msra.mxu0 %v1405
        %1441 = vmatprep.subr.bf16.mxu0 0
        %1442 = vmatpush1.bf16.msra.mxu0 %v1406
        %1443 = vmatprep.subr.bf16.mxu0 0
        %1444 = vmatpush1.bf16.msra.mxu0 %v1407
        %1445 = vmatprep.subr.bf16.mxu0 0
        %1446 = vmatpush1.bf16.msra.mxu0 %v1408
        %1447 = vmatprep.subr.bf16.mxu0 0
        %1448 = vmatpush1.bf16.msra.mxu0 %v1409
        %1449 = vmatprep.subr.bf16.mxu0 0
        %1450 = vmatpush1.bf16.msra.mxu0 %v1410
        %1451 = vmatprep.subr.bf16.mxu0 0
        %1452 = vmatpush1.bf16.msra.mxu0 %v1411
        %1453 = vmatprep.subr.bf16.mxu0 0
        %1454 = vmatpush1.bf16.msra.mxu0 %v1412
        %1455 = vmatprep.subr.bf16.mxu0 0
        %1456 = vmatpush1.bf16.msra.mxu0 %v1413
        %1457 = vmatprep.subr.bf16.mxu0 0
        %1458 = vmatpush1.bf16.msra.mxu0 %v1414
        %1459 = vmatprep.subr.bf16.mxu0 0
        %1460 = vmatpush1.bf16.msra.mxu0 %v1415
        %1461 = vmatprep.subr.bf16.mxu0 0
        %1462 = vmatpush1.bf16.msra.mxu0 %v1416
        %1463 = vmatprep.subr.bf16.mxu0 0
        %1464 = vmatpush1.bf16.msra.mxu0 %v1417
        %1465 = vmatprep.subr.bf16.mxu0 0
        %1466 = vmatpush1.bf16.msra.mxu0 %v1418
        %1467 = vmatprep.mubr.bf16.mxu0 %v1302
        %1468 = vmatmul.mubr.bf16.gmra.mrb[0].mxu0 %v1301
        %v1469 = vpop.f32.mrb[0].mxu0
        %v1470 = vadd.f32 %v1337, %v1469
        %v1471 = vpop.f32.mrb[0].mxu0
        %v1472 = vpop.f32.mrb[0].mxu0
        %v1473 = vadd.f32 %v1337, %v1472
        %v1474 = vpop.f32.mrb[0].mxu0
        %1475 = vmatprep.mubr.bf16.mxu0 %v1304
        %1476 = vmatmul.mubr.bf16.gmra.mrb[0].mxu0 %v1303
        %v1477 = vpop.f32.mrb[0].mxu0
        %v1478 = vadd.f32 %v1337, %v1477
        %v1479 = vpop.f32.mrb[0].mxu0
        %v1480 = vpop.f32.mrb[0].mxu0
        %v1481 = vadd.f32 %v1337, %v1480
        %v1482 = vpop.f32.mrb[0].mxu0
        %1483 = vmatprep.mubr.bf16.mxu0 %v1306
        %1484 = vmatmul.mubr.bf16.gmra.mrb[0].mxu0 %v1305
        %v1485 = vpop.f32.mrb[0].mxu0
        %v1486 = vadd.f32 %v1337, %v1485
        %v1487 = vpop.f32.mrb[0].mxu0
        %v1488 = vpop.f32.mrb[0].mxu0
        %v1489 = vadd.f32 %v1337, %v1488
        %v1490 = vpop.f32.mrb[0].mxu0
        %1491 = vmatprep.mubr.bf16.mxu0 %v1308
        %1492 = vmatmul.mubr.bf16.gmra.mrb[0].mxu0 %v1307
        %v1493 = vpop.f32.mrb[0].mxu0
        %v1494 = vadd.f32 %v1337, %v1493
        %v1495 = vpop.f32.mrb[0].mxu0
        %v1496 = vpop.f32.mrb[0].mxu0
        %v1497 = vadd.f32 %v1337, %v1496
        %v1498 = vpop.f32.mrb[0].mxu0
        %1499 = vmatprep.mubr.bf16.mxu0 %v1310
        %1500 = vmatmul.mubr.bf16.gmra.mrb[0].mxu0 %v1309
        %v1501 = vpop.f32.mrb[0].mxu0
        %v1502 = vadd.f32 %v1337, %v1501
        %v1503 = vpop.f32.mrb[0].mxu0
        %v1504 = vpop.f32.mrb[0].mxu0
        %v1505 = vadd.f32 %v1337, %v1504
        %v1506 = vpop.f32.mrb[0].mxu0
        %1507 = vmatprep.mubr.bf16.mxu0 %v1312
        %1508 = vmatmul.mubr.bf16.gmra.mrb[0].mxu0 %v1311
        %v1509 = vpop.f32.mrb[0].mxu0
        %v1510 = vadd.f32 %v1337, %v1509
        %v1511 = vpop.f32.mrb[0].mxu0
        %v1512 = vpop.f32.mrb[0].mxu0
        %v1513 = vadd.f32 %v1337, %v1512
        %v1514 = vpop.f32.mrb[0].mxu0
        %1515 = vmatprep.mubr.bf16.mxu0 %v1314
        %1516 = vmatmul.mubr.bf16.gmra.mrb[0].mxu0 %v1313
        %v1517 = vpop.f32.mrb[0].mxu0
        %v1518 = vadd.f32 %v1337, %v1517
        %v1519 = vpop.f32.mrb[0].mxu0
        %v1520 = vpop.f32.mrb[0].mxu0
        %v1521 = vadd.f32 %v1337, %v1520
        %v1522 = vpop.f32.mrb[0].mxu0
        %1523 = vmatprep.mubr.bf16.mxu0 %v1316
        %1524 = vmatmul.mubr.bf16.gmra.mrb[0].mxu0 %v1315
        %v1525 = vpop.f32.mrb[0].mxu0
        %v1526 = vadd.f32 %v1337, %v1525
        %v1527 = vpop.f32.mrb[0].mxu0
        %v1528 = vpop.f32.mrb[0].mxu0
        %v1529 = vadd.f32 %v1337, %v1528
        %v1530 = vpop.f32.mrb[0].mxu0
        %1531 = vmatprep.mubr.bf16.mxu0 %v1318
        %1532 = vmatmul.mubr.bf16.gmra.mrb[0].mxu0 %v1317
        %v1533 = vpop.f32.mrb[0].mxu0
        %v1534 = vadd.f32 %v1337, %v1533
        %v1535 = vpop.f32.mrb[0].mxu0
        %v1536 = vpop.f32.mrb[0].mxu0
        %v1537 = vadd.f32 %v1337, %v1536
        %v1538 = vpop.f32.mrb[0].mxu0
        %1539 = vmatprep.mubr.bf16.mxu0 %v1320
        %1540 = vmatmul.mubr.bf16.gmra.mrb[0].mxu0 %v1319
        %v1541 = vpop.f32.mrb[0].mxu0
        %v1542 = vadd.f32 %v1337, %v1541
        %v1543 = vpop.f32.mrb[0].mxu0
        %v1544 = vpop.f32.mrb[0].mxu0
        %v1545 = vadd.f32 %v1337, %v1544
        %v1546 = vpop.f32.mrb[0].mxu0
        %1547 = vmatprep.mubr.bf16.mxu0 %v1322
        %1548 = vmatmul.mubr.bf16.gmra.mrb[0].mxu0 %v1321
        %v1549 = vpop.f32.mrb[0].mxu0
        %v1550 = vadd.f32 %v1337, %v1549
        %v1551 = vpop.f32.mrb[0].mxu0
        %v1552 = vpop.f32.mrb[0].mxu0
        %v1553 = vadd.f32 %v1337, %v1552
        %v1554 = vpop.f32.mrb[0].mxu0
        %1555 = vmatprep.mubr.bf16.mxu0 %v1324
        %1556 = vmatmul.mubr.bf16.gmra.mrb[0].mxu0 %v1323
        %v1557 = vpop.f32.mrb[0].mxu0
        %v1558 = vadd.f32 %v1337, %v1557
        %v1559 = vpop.f32.mrb[0].mxu0
        %v1560 = vpop.f32.mrb[0].mxu0
        %v1561 = vadd.f32 %v1337, %v1560
        %v1562 = vpop.f32.mrb[0].mxu0
        %1563 = vmatprep.mubr.bf16.mxu0 %v1326
        %1564 = vmatmul.mubr.bf16.gmra.mrb[0].mxu0 %v1325
        %v1565 = vpop.f32.mrb[0].mxu0
        %v1566 = vadd.f32 %v1337, %v1565
        %v1567 = vpop.f32.mrb[0].mxu0
        %v1568 = vpop.f32.mrb[0].mxu0
        %v1569 = vadd.f32 %v1337, %v1568
        %v1570 = vpop.f32.mrb[0].mxu0
        %1571 = vmatprep.mubr.bf16.mxu0 %v1328
        %1572 = vmatmul.mubr.bf16.gmra.mrb[0].mxu0 %v1327
        %v1573 = vpop.f32.mrb[0].mxu0
        %v1574 = vadd.f32 %v1337, %v1573
        %v1575 = vpop.f32.mrb[0].mxu0
        %v1576 = vpop.f32.mrb[0].mxu0
        %v1577 = vadd.f32 %v1337, %v1576
        %v1578 = vpop.f32.mrb[0].mxu0
        %1579 = vmatprep.mubr.bf16.mxu0 %v1330
        %1580 = vmatmul.mubr.bf16.gmra.mrb[0].mxu0 %v1329
        %v1581 = vpop.f32.mrb[0].mxu0
        %v1582 = vadd.f32 %v1337, %v1581
        %v1583 = vpop.f32.mrb[0].mxu0
        %v1584 = vpop.f32.mrb[0].mxu0
        %v1585 = vadd.f32 %v1337, %v1584
        %v1586 = vpop.f32.mrb[0].mxu0
        %1587 = vmatprep.mubr.bf16.mxu0 %v1332
        %1588 = vmatmul.mubr.bf16.gmra.mrb[0].mxu0 %v1331
        %v1589 = vpop.f32.mrb[0].mxu0
        %v1590 = vadd.f32 %v1337, %v1589
        %v1591 = vpop.f32.mrb[0].mxu0
        %v1592 = vpop.f32.mrb[0].mxu0
        %v1593 = vadd.f32 %v1337, %v1592
        %v1594 = vpop.f32.mrb[0].mxu0
        %1595 = vdwg.mxu0
        %v1596 = vadd.f32 %v329, %v1470
        %v1597 = vadd.f32 %v330, %v1473
        %v1598 = vadd.f32 %v331, %v1478
        %v1599 = vadd.f32 %v332, %v1481
        %v1600 = vadd.f32 %v333, %v1486
        %v1601 = vadd.f32 %v334, %v1489
        %v1602 = vadd.f32 %v335, %v1494
        %v1603 = vadd.f32 %v336, %v1497
        %v1604 = vadd.f32 %v337, %v1502
        %v1605 = vadd.f32 %v338, %v1505
        %v1606 = vadd.f32 %v339, %v1510
        %v1607 = vadd.f32 %v340, %v1513
        %v1608 = vadd.f32 %v341, %v1518
        %v1609 = vadd.f32 %v342, %v1521
        %v1610 = vadd.f32 %v343, %v1526
        %v1611 = vadd.f32 %v344, %v1529
        %v1612 = vadd.f32 %v345, %v1534
        %v1613 = vadd.f32 %v346, %v1537
        %v1614 = vadd.f32 %v347, %v1542
        %v1615 = vadd.f32 %v348, %v1545
        %v1616 = vadd.f32 %v349, %v1550
        %v1617 = vadd.f32 %v350, %v1553
        %v1618 = vadd.f32 %v351, %v1558
        %v1619 = vadd.f32 %v352, %v1561
        %v1620 = vadd.f32 %v353, %v1566
        %v1621 = vadd.f32 %v354, %v1569
        %v1622 = vadd.f32 %v355, %v1574
        %v1623 = vadd.f32 %v356, %v1577
        %v1624 = vadd.f32 %v357, %v1582
        %v1625 = vadd.f32 %v358, %v1585
        %v1626 = vadd.f32 %v359, %v1590
        %v1627 = vadd.f32 %v360, %v1593
        %1628 = vst [vmem:[%s325] sm:$0xff] %v1596
        %1629 = vst [vmem:[%s325 + $0x8] sm:$0xff] %v1597
        %1630 = vst [vmem:[%s325 + $0x10] sm:$0xff] %v1598
        %1631 = vst [vmem:[%s325 + $0x18] sm:$0xff] %v1599
        %1632 = vst [vmem:[%s325 + $0x20] sm:$0xff] %v1600
        %1633 = vst [vmem:[%s325 + $0x28] sm:$0xff] %v1601
        %1634 = vst [vmem:[%s325 + $0x30] sm:$0xff] %v1602
        %1635 = vst [vmem:[%s325 + $0x38] sm:$0xff] %v1603
        %1636 = vst [vmem:[%s325 + $0x40] sm:$0xff] %v1604
        %1637 = vst [vmem:[%s325 + $0x48] sm:$0xff] %v1605
        %1638 = vst [vmem:[%s325 + $0x50] sm:$0xff] %v1606
        %1639 = vst [vmem:[%s325 + $0x58] sm:$0xff] %v1607
        %1640 = vst [vmem:[%s325 + $0x60] sm:$0xff] %v1608
        %1641 = vst [vmem:[%s325 + $0x68] sm:$0xff] %v1609
        %1642 = vst [vmem:[%s325 + $0x70] sm:$0xff] %v1610
        %1643 = vst [vmem:[%s325 + $0x78] sm:$0xff] %v1611
        %1644 = vst [vmem:[%s325 + $0x80] sm:$0xff] %v1612
        %1645 = vst [vmem:[%s325 + $0x88] sm:$0xff] %v1613
        %1646 = vst [vmem:[%s325 + $0x90] sm:$0xff] %v1614
        %1647 = vst [vmem:[%s325 + $0x98] sm:$0xff] %v1615
        %1648 = vst [vmem:[%s325 + $0xa0] sm:$0xff] %v1616
        %1649 = vst [vmem:[%s325 + $0xa8] sm:$0xff] %v1617
        %1650 = vst [vmem:[%s325 + $0xb0] sm:$0xff] %v1618
        %1651 = vst [vmem:[%s325 + $0xb8] sm:$0xff] %v1619
        %1652 = vst [vmem:[%s325 + $0xc0] sm:$0xff] %v1620
        %1653 = vst [vmem:[%s325 + $0xc8] sm:$0xff] %v1621
        %1654 = vst [vmem:[%s325 + $0xd0] sm:$0xff] %v1622
        %1655 = vst [vmem:[%s325 + $0xd8] sm:$0xff] %v1623
        %1656 = vst [vmem:[%s325 + $0xe0] sm:$0xff] %v1624
        %1657 = vst [vmem:[%s325 + $0xe8] sm:$0xff] %v1625
        %1658 = vst [vmem:[%s325 + $0xf0] sm:$0xff] %v1626
        %1659 = vst [vmem:[%s325 + $0xf8] sm:$0xff] %v1627
        %s1660 = sand.u32 %s185, 1
        %s1661 = scalar_lea.sflag [#allocation4], %s1660
        %s1662 = sand.u32 %s185, 1
        %s1663 = smul.addr %s1662, 256
        %s1664 = scalar_lea.vmem [#allocation8], %s1663
        // Predicated region
        $region61: #{tpu_custom_call.1} parent=47 // pred_check
          %p1665 = pneg %p195
        $region62: #{tpu_custom_call.1} parent=47 // pred_check_branch
          %1667 = sbr.rel (%p1665) target = $region64
        $region63: #{tpu_custom_call.1} parent=47 // pred_region
          %s1668 = smul.u32 32, %s25
          %s1670 = ssub.s32 4096, 4096
          %1671 = vsyncadd %s1661, %s1670
          %s1672 = smul.addr %s1668, 128
          %s1673 = scalar_lea.hbm %s7, %s1672
          %s1674 = sshll.u32 %s1664, 4
          %s1675 = int_to_ptr.vmem [resolvable:$true] %s1674
          %1680 = dma.vmem_to_hbm [thread:$0]  %s1675, 4096, %s1673, %s1661, 128, 128, 8
        $region64: #{tpu_custom_call.1} parent=47 // pred_fallthru
          _
      $region48: #{tpu_custom_call.1} parent=5 // pred_fallthru
        _
      %p1681 = scmp.le.s32.totalorder 2, %s20
      // Predicated region
      $region65: #{tpu_custom_call.1} parent=5 // pred_check
        %p1682 = pneg %p1681
      $region66: #{tpu_custom_call.1} parent=5 // pred_check_branch
        %1684 = sbr.rel (%p1682) target = $region68
      $region67: #{tpu_custom_call.1} parent=5 // pred_region
        %s1685 = ssub.s32 %s20, 2
        // Predicated region
        $region69: #{tpu_custom_call.1} parent=67 // pred_check
          %p1686 = pneg %p201
        $region70: #{tpu_custom_call.1} parent=67 // pred_check_branch
          %1688 = sbr.rel (%p1686) target = $region72
        $region71: #{tpu_custom_call.1} parent=67 // pred_region
          %s1689 = sand.u32 %s186, 1
          %s1690 = scalar_lea.sflag [#allocation4], %s1689
          %s1691 = sand.u32 %s186, 1
          %s1692 = smul.addr %s1691, 256
          %s1693 = scalar_lea.vmem [#allocation8], %s1692
          %1694 = dma.done %s1690, 4096
        $region72: #{tpu_custom_call.1} parent=67 // pred_fallthru
          _
      $region68: #{tpu_custom_call.1} parent=5 // pred_fallthru
        _
    $region6: #{tpu_custom_call.1} parent=1 // loop_footer
      %s24 = sadd.s32 1, %s20
    $region7: #{tpu_custom_call.1} parent=1 // loop_footer_branch
      %19 = sbr.rel target = $region3
    $region8: #{tpu_custom_call.1} parent=1 // loop_exit
      _
    %1695 = vsyncpa [#allocation3], 1
    %s1696 = scalar_lea.sflag [#allocation3], 1
    %1697 = vsyncpa %s1696, 1
    %1698 = vsyncpa [#allocation6], 1
    %1699 = vsyncpa [#allocation4], 1
    %s1700 = scalar_lea.sflag [#allocation4], 1
    %1701 = vsyncpa %s1700, 1

</llo_original>
